<compile_context>
chip_gen: v6e
topology: v6e:2x2x1
jax: 0.10.0
libtpu: 0.0.40
codegen_flags: <defaults>
</compile_context>

<pallas_src>
import functools
import math

import jax
import jax.numpy as jnp
from jax import lax
from jax.experimental import pallas as pl
from jax.experimental.pallas import tpu as pltpu

# Safe on all generations: raises v5e's 16 MiB scoped default, equals v6e/v7x default,
# and stays well under v7x's 64 MiB physical VMEM.
_VMEM_LIMIT_BYTES = 32 * 1024 * 1024


def _fit_tile(dim, cap, align):
    """Largest block size <= cap that is a multiple of `align` and divides `dim`.
    Falls back to the full dimension (always a legal BlockSpec block)."""
    if dim <= cap:
        return dim
    t = (cap // align) * align
    while t >= align:
        if dim % t == 0:
            return t
        t -= align
    return dim


# ------------------- fused kv/q projection + multi-head attention ------------------ #

def _proj_attn_kernel(*refs, num_heads, head_dim, use_mask):
    if use_mask:
        x_ref, y_ref, wkv_ref, bkv_ref, wq_ref, bq_ref, mask_ref, o_ref = refs
    else:
        x_ref, y_ref, wkv_ref, bkv_ref, wq_ref, bq_ref, o_ref = refs

    # One batch element per grid step; x/y read once -> cast once (bf16 MXU inputs).
    x_b = x_ref[0].astype(jnp.bfloat16)                         # (S, D)
    y_b = y_ref[0].astype(jnp.bfloat16)                         # (S, D)

    # Projections with the weights resident in VMEM (constant index_maps).
    kv = (jnp.dot(x_b, wkv_ref[...], preferred_element_type=jnp.float32)
          + bkv_ref[...]).astype(jnp.bfloat16)                  # (S, 2D)
    # w_q / b_q already carry the 1/sqrt(head_dim) factor (folded at construction).
    q = (jnp.dot(y_b, wq_ref[...], preferred_element_type=jnp.float32)
         + bq_ref[...]).astype(jnp.bfloat16)                    # (S, D)

    mask = mask_ref[...] if use_mask else None                  # hoisted out of head loop
    hd = head_dim

    # Head split = static lane slices of the VMEM-resident q / kv; no HBM-side
    # transpose or chunk of q/k/v is ever materialized.
    for h in range(num_heads):
        q_h = q[:, h * hd:(h + 1) * hd]                          # (S, hd)
        k_h = kv[:, 2 * h * hd: 2 * h * hd + hd]                 # (S, hd)
        v_h = kv[:, 2 * h * hd + hd: 2 * (h + 1) * hd]           # (S, hd)

        # q @ k^T via dot_general contracting the last dims (no materialized transpose).
        s = lax.dot_general(q_h, k_h, (((1,), (1,)), ((), ())),
                            preferred_element_type=jnp.float32)  # (S, S) f32
        if use_mask:
            s = s + mask

        m = jnp.max(s, axis=-1, keepdims=True)
        e = jnp.exp(s - m)
        l = jnp.sum(e, axis=-1, keepdims=True)
        p = (e * pl.reciprocal(l, approx=True)).astype(jnp.bfloat16)
        o_h = jnp.dot(p, v_h, preferred_element_type=jnp.float32)   # (S, hd)

        # Lane-dense output: head h occupies lanes [h*hd, (h+1)*hd) of the (S, D) block.
        o_ref[0, :, h * hd:(h + 1) * hd] = o_h.astype(o_ref.dtype)


def fused_qkv_attention(x, y, w_kv, b_kv, w_q_scaled, b_q_scaled, mask, num_heads):
    """x, y: (B, S, D) f32.  Returns (B, S, D) bf16 where lanes [h*hd,(h+1)*hd) of
    row (b, s) hold head h's attention output at sequence position s."""
    B, S, D = x.shape
    hd = D // num_heads
    use_mask = mask is not None
    kernel = functools.partial(_proj_attn_kernel, num_heads=num_heads,
                               head_dim=hd, use_mask=use_mask)

    batch_map = lambda b: (b, 0, 0)
    const_map = lambda b: (0, 0)
    in_specs = [
        pl.BlockSpec((1, S, D), batch_map),           # x  (per batch element)
        pl.BlockSpec((1, S, D), batch_map),           # y  (per batch element)
        pl.BlockSpec((D, 2 * D), const_map),          # w_kv  (resident, DMA'd once)
        pl.BlockSpec((1, 2 * D), const_map),          # b_kv
        pl.BlockSpec((D, D), const_map),              # w_q (pre-scaled, resident)
        pl.BlockSpec((1, D), const_map),              # b_q (pre-scaled)
    ]
    args = [x, y, w_kv, b_kv.reshape(1, -1), w_q_scaled, b_q_scaled.reshape(1, -1)]
    if use_mask:
        assert mask.shape == (S, S)
        in_specs.append(pl.BlockSpec((S, S), const_map))   # resident additive mask
        args.append(mask.astype(jnp.float32))

    return pl.pallas_call(
        kernel,
        out_shape=jax.ShapeDtypeStruct((B, S, D), jnp.bfloat16),
        grid=(B,),
        in_specs=in_specs,
        out_specs=pl.BlockSpec((1, S, D), batch_map),
        compiler_params=pltpu.CompilerParams(
            dimension_semantics=("parallel",),
            vmem_limit_bytes=_VMEM_LIMIT_BYTES,
        ),
    )(*args)


# ------------------------------- tiled linear kernel ------------------------------- #

def _linear_kernel(x_ref, w_ref, b_ref, o_ref, acc_ref):
    # One (tm, tn) output tile; K is the innermost ("arbitrary") grid axis.
    @pl.when(pl.program_id(2) == 0)
    def _init():
        acc_ref[...] = jnp.zeros_like(acc_ref)

    xv = x_ref[...]
    if xv.dtype != jnp.bfloat16:          # activations are already bf16 on the hot path
        xv = xv.astype(jnp.bfloat16)
    acc_ref[...] += jnp.dot(xv, w_ref[...], preferred_element_type=jnp.float32)

    @pl.when(pl.program_id(2) == pl.num_programs(2) - 1)
    def _finalize():
        o_ref[...] = (acc_ref[...] + b_ref[...]).astype(o_ref.dtype)


def pallas_linear(x2d, w_bf16, b_f32, out_dtype=jnp.float32, tm=256, tn=256, tk=512):
    """x2d: (M, K); w: (K, N) bf16; b: (N,) f32  ->  (M, N) = x @ w + b  in out_dtype."""
    M, K = x2d.shape
    K2, N = w_bf16.shape
    assert K == K2
    tm = _fit_tile(M, tm, 16)       # 16-sublane aligned (bf16-safe) or full dim
    tn = _fit_tile(N, tn, 128)      # lane-dense tiles
    tk = _fit_tile(K, tk, 128)
    grid = (M // tm, N // tn, K // tk)
    return pl.pallas_call(
        _linear_kernel,
        out_shape=jax.ShapeDtypeStruct((M, N), out_dtype),
        grid=grid,
        in_specs=[
            pl.BlockSpec((tm, tk), lambda i, j, k: (i, k)),
            pl.BlockSpec((tk, tn), lambda i, j, k: (k, j)),
            pl.BlockSpec((1, tn), lambda i, j, k: (0, j)),
        ],
        out_specs=pl.BlockSpec((tm, tn), lambda i, j, k: (i, j)),
        scratch_shapes=[pltpu.VMEM((tm, tn), jnp.float32)],
        compiler_params=pltpu.CompilerParams(
            dimension_semantics=("parallel", "parallel", "arbitrary"),
            vmem_limit_bytes=_VMEM_LIMIT_BYTES,
        ),
    )(x2d, w_bf16, b_f32.reshape(1, N))


# --------------------------- module wrapper (parameters) --------------------------- #

class MultiHeadCrossAttentionPallas:
    def __init__(self, d_model, num_heads, key):
        assert d_model % num_heads == 0
        self.d_model = d_model
        self.num_heads = num_heads
        self.head_dim = d_model // num_heads
        self.scale = 1.0 / math.sqrt(self.head_dim)

        ks = jax.random.split(key, 6)
        bound = 1.0 / math.sqrt(d_model)     # PyTorch nn.Linear default init

        def u(k, shape):
            return jax.random.uniform(k, shape, jnp.float32, -bound, bound)

        # Weights stored (in, out) so kernels compute x @ W + b; bf16 for the MXU.
        self.w_kv = u(ks[0], (d_model, 2 * d_model)).astype(jnp.bfloat16)
        self.b_kv = u(ks[1], (2 * d_model,))
        self.w_q = u(ks[2], (d_model, d_model)).astype(jnp.bfloat16)
        self.b_q = u(ks[3], (d_model,))
        self.w_out = u(ks[4], (d_model, d_model)).astype(jnp.bfloat16)
        self.b_out = u(ks[5], (d_model,))

        # 1/sqrt(head_dim) folded into the q projection once at construction
        # (scale is an exact power of two for hd = 16, so this is numerically exact).
        self.w_q_scaled = (self.w_q.astype(jnp.float32) * self.scale).astype(jnp.bfloat16)
        self.b_q_scaled = self.b_q * self.scale

    def __call__(self, x, y, mask=None):
        B, S, D = x.shape
        assert y.shape == (B, S, D)          # module uses x's sequence length for both
        H, hd = self.num_heads, self.head_dim

        # Fused kv/q projection + attention (single pallas_call, lane-dense output).
        attn = fused_qkv_attention(x, y, self.w_kv, self.b_kv,
                                   self.w_q_scaled, self.b_q_scaled, mask, H)

        # Reproduce the PyTorch module's no-permute reshape (B, H, S, hd) -> (B, S, D):
        # attn[b, s, h*hd+d] == values[b, h, s, d], so values.reshape(B, S, D) equals the
        # chain below.  Done as cheap wrapper-side layout plumbing on a small bf16 tensor
        # (the flatten mixes sequence rows, so it cannot be folded into w_out).
        values = jnp.transpose(attn.reshape(B, S, H, hd), (0, 2, 1, 3)).reshape(B * S, D)

        out = pallas_linear(values, self.w_out, self.b_out, out_dtype=jnp.float32)
        return out.reshape(B, S, D)


# ------------------------------------ JAX reference --------------------------------- #

def reference_mhca(m, x, y, mask=None):
    B, S, D = x.shape
    H, hd = m.num_heads, m.head_dim
    bf = jnp.bfloat16
    scale = 1.0 / math.sqrt(hd)

    def lin(a2d, w, b, out_dtype):
        acc = jnp.dot(a2d.astype(bf), w, preferred_element_type=jnp.float32)
        return (acc + b).astype(out_dtype)

    kv = lin(x.reshape(B * S, D), m.w_kv, m.b_kv, bf).reshape(B, S, H, 2 * hd)
    q = lin(y.reshape(B * S, D), m.w_q, m.b_q, bf).reshape(B, S, H, hd)
    kv = kv.transpose(0, 2, 1, 3)            # (B, H, S, 2hd)
    q = q.transpose(0, 2, 1, 3)              # (B, H, S, hd)
    k, v = kv[..., :hd], kv[..., hd:]

    s = jnp.einsum('bhqd,bhkd->bhqk', q, k,
                   preferred_element_type=jnp.float32) * scale
    if mask is not None:
        s = s + mask
    mx = jnp.max(s, axis=-1, keepdims=True)
    e = jnp.exp(s - mx)
    p = e / jnp.sum(e, axis=-1, keepdims=True)
    values = jnp.einsum('bhqk,bhkd->bhqd', p.astype(bf), v,
                        preferred_element_type=jnp.float32).astype(bf)
    values = values.reshape(B * S, D)        # PyTorch-style reshape (no permute back)
    return lin(values, m.w_out, m.b_out, jnp.float32).reshape(B, S, D)


# ------------------------------------------ main ------------------------------------ #

if __name__ == "__main__":
    key = jax.random.PRNGKey(0)
    k_param, k_x, k_y = jax.random.split(key, 3)

    # Small shapes consistent with the spec (d_model=128, num_heads=8), short sequence.
    batch, seq, d_model, num_heads = 2, 8, 128, 8

    mhca = MultiHeadCrossAttentionPallas(d_model, num_heads, k_param)
    x = jax.random.normal(k_x, (batch, seq, d_model), jnp.float32)   # encoder stream
    y = jax.random.normal(k_y, (batch, seq, d_model), jnp.float32)   # decoder stream

    # Additive mask like torch.triu(..., diagonal=1) filled with -inf.
    row = jnp.arange(seq)[:, None]
    col = jnp.arange(seq)[None, :]
    causal_mask = jnp.where(col > row, -jnp.inf, 0.0).astype(jnp.float32)

    # Tolerances cover bf16 weights/intermediates (f32 accumulation) and the
    # EUP approximate reciprocal used for the softmax denominator.
    atol = rtol = 3e-3

    out = mhca(x, y, mask=causal_mask)
    jax.block_until_ready(out)
    assert out.shape == (batch, seq, d_model)
    ref = reference_mhca(mhca, x, y, mask=causal_mask)
    assert jnp.allclose(out, ref, atol=atol, rtol=rtol), \
        float(jnp.max(jnp.abs(out - ref)))

    # mask=None path (DecoderLayer's default cross_attention_mask) — dedicated kernel
    # variant with no mask input / no mask add compiled in.
    out_nm = mhca(x, y, mask=None)
    jax.block_until_ready(out_nm)
    ref_nm = reference_mhca(mhca, x, y, mask=None)
    assert jnp.allclose(out_nm, ref_nm, atol=atol, rtol=rtol), \
        float(jnp.max(jnp.abs(out_nm - ref_nm)))

    print("KERNEL_OK")
</pallas_src>

<mosaic_0001>
module attributes {stable_mosaic.version = 11 : i64} {
  func.func @_proj_attn_kernel(%arg0: i32, %arg1: memref<1x8x128xf32, #tpu.memory_space<vmem>>, %arg2: memref<1x8x128xf32, #tpu.memory_space<vmem>>, %arg3: memref<128x256xbf16, #tpu.memory_space<vmem>>, %arg4: memref<1x256xf32, #tpu.memory_space<vmem>>, %arg5: memref<128x128xbf16, #tpu.memory_space<vmem>>, %arg6: memref<1x128xf32, #tpu.memory_space<vmem>>, %arg7: memref<8x8xf32, #tpu.memory_space<vmem>>, %arg8: memref<1x8x128xbf16, #tpu.memory_space<vmem>>) attributes {dimension_semantics = [#tpu.dimension_semantics<parallel>], iteration_bounds = array<i64: 2>, scalar_prefetch = 0 : i64, scratch_operands = 0 : i64, tpu.core_type = #tpu.core_type<tc>, window_params = [{transform_indices = @transform_0, window_bounds = array<i64: 1, 8, 128>}, {transform_indices = @transform_1, window_bounds = array<i64: 1, 8, 128>}, {pipeline_mode = #tpu.pipeline_mode<synchronous>, transform_indices = @transform_2, window_bounds = array<i64: 128, 256>}, {pipeline_mode = #tpu.pipeline_mode<synchronous>, transform_indices = @transform_3, window_bounds = array<i64: 1, 256>}, {pipeline_mode = #tpu.pipeline_mode<synchronous>, transform_indices = @transform_4, window_bounds = array<i64: 128, 128>}, {pipeline_mode = #tpu.pipeline_mode<synchronous>, transform_indices = @transform_5, window_bounds = array<i64: 1, 128>}, {pipeline_mode = #tpu.pipeline_mode<synchronous>, transform_indices = @transform_6, window_bounds = array<i64: 8, 8>}, {transform_indices = @transform_7, window_bounds = array<i64: 1, 8, 128>}]} {
    %c0 = arith.constant 0 : index
    %c0_0 = arith.constant 0 : index
    %c0_1 = arith.constant 0 : index
    %0 = vector.load %arg1[%c0, %c0_0, %c0_1] : memref<1x8x128xf32, #tpu.memory_space<vmem>>, vector<1x8x128xf32>
    %1 = vector.shape_cast %0 : vector<1x8x128xf32> to vector<8x128xf32>
    %2 = arith.truncf %1 : vector<8x128xf32> to vector<8x128xbf16>
    %c0_2 = arith.constant 0 : index
    %c0_3 = arith.constant 0 : index
    %c0_4 = arith.constant 0 : index
    %3 = vector.load %arg2[%c0_2, %c0_3, %c0_4] : memref<1x8x128xf32, #tpu.memory_space<vmem>>, vector<1x8x128xf32>
    %4 = vector.shape_cast %3 : vector<1x8x128xf32> to vector<8x128xf32>
    %5 = arith.truncf %4 : vector<8x128xf32> to vector<8x128xbf16>
    %c0_5 = arith.constant 0 : index
    %c0_6 = arith.constant 0 : index
    %6 = vector.load %arg3[%c0_5, %c0_6] : memref<128x256xbf16, #tpu.memory_space<vmem>>, vector<128x256xbf16>
    %cst = arith.constant dense<0.000000e+00> : vector<8x256xf32>
    %7 = tpu.matmul %2, %6, %cst {dimension_numbers = #tpu.dot_dimension_numbers<[1], [0], [0], [1], [0, 0, 1, 1], [], []>} : vector<8x128xbf16>, vector<128x256xbf16>, vector<8x256xf32> -> vector<8x256xf32>
    %c0_7 = arith.constant 0 : index
    %c0_8 = arith.constant 0 : index
    %8 = vector.load %arg4[%c0_7, %c0_8] : memref<1x256xf32, #tpu.memory_space<vmem>>, vector<1x256xf32>
    %9 = vector.broadcast %8 : vector<1x256xf32> to vector<8x256xf32>
    %10 = arith.addf %7, %9 : vector<8x256xf32>
    %11 = arith.truncf %10 : vector<8x256xf32> to vector<8x256xbf16>
    %c0_9 = arith.constant 0 : index
    %c0_10 = arith.constant 0 : index
    %12 = vector.load %arg5[%c0_9, %c0_10] : memref<128x128xbf16, #tpu.memory_space<vmem>>, vector<128x128xbf16>
    %cst_11 = arith.constant dense<0.000000e+00> : vector<8x128xf32>
    %13 = tpu.matmul %5, %12, %cst_11 {dimension_numbers = #tpu.dot_dimension_numbers<[1], [0], [0], [1], [0, 0, 1, 1], [], []>} : vector<8x128xbf16>, vector<128x128xbf16>, vector<8x128xf32> -> vector<8x128xf32>
    %c0_12 = arith.constant 0 : index
    %c0_13 = arith.constant 0 : index
    %14 = vector.load %arg6[%c0_12, %c0_13] : memref<1x128xf32, #tpu.memory_space<vmem>>, vector<1x128xf32>
    %15 = vector.broadcast %14 : vector<1x128xf32> to vector<8x128xf32>
    %16 = arith.addf %13, %15 : vector<8x128xf32>
    %17 = arith.truncf %16 : vector<8x128xf32> to vector<8x128xbf16>
    %c0_14 = arith.constant 0 : index
    %c0_15 = arith.constant 0 : index
    %18 = vector.load %arg7[%c0_14, %c0_15] : memref<8x8xf32, #tpu.memory_space<vmem>>, vector<8x8xf32>
    %19 = vector.extract_strided_slice %17 {offsets = [0, 0], sizes = [8, 16], strides = [1, 1]} : vector<8x128xbf16> to vector<8x16xbf16>
    %20 = vector.extract_strided_slice %11 {offsets = [0, 0], sizes = [8, 16], strides = [1, 1]} : vector<8x256xbf16> to vector<8x16xbf16>
    %21 = vector.extract_strided_slice %11 {offsets = [0, 16], sizes = [8, 16], strides = [1, 1]} : vector<8x256xbf16> to vector<8x16xbf16>
    %cst_16 = arith.constant dense<0.000000e+00> : vector<8x8xf32>
    %22 = tpu.matmul %19, %20, %cst_16 {dimension_numbers = #tpu.dot_dimension_numbers<[1], [1], [0], [0], [0, 0, 1, 0], [], []>} : vector<8x16xbf16>, vector<8x16xbf16>, vector<8x8xf32> -> vector<8x8xf32>
    %23 = arith.addf %22, %18 : vector<8x8xf32>
    %cst_17 = arith.constant dense<0xFF800000> : vector<8xf32>
    %24 = vector.multi_reduction <maximumf>, %23, %cst_17 [1] : vector<8x8xf32> to vector<8xf32>
    %25 = vector.shape_cast %24 : vector<8xf32> to vector<8x1xf32>
    %26 = vector.broadcast %25 : vector<8x1xf32> to vector<8x8xf32>
    %27 = arith.subf %23, %26 : vector<8x8xf32>
    %28 = math.exp %27 : vector<8x8xf32>
    %cst_18 = arith.constant dense<0.000000e+00> : vector<8xf32>
    %29 = vector.multi_reduction <add>, %28, %cst_18 [1] : vector<8x8xf32> to vector<8xf32>
    %30 = vector.shape_cast %29 : vector<8xf32> to vector<8x1xf32>
    %31 = tpu.reciprocal %30 {approx = true} : vector<8x1xf32> -> vector<8x1xf32>
    %32 = vector.broadcast %31 : vector<8x1xf32> to vector<8x8xf32>
    %33 = arith.mulf %28, %32 : vector<8x8xf32>
    %34 = arith.truncf %33 : vector<8x8xf32> to vector<8x8xbf16>
    %cst_19 = arith.constant dense<0.000000e+00> : vector<8x16xf32>
    %35 = tpu.matmul %34, %21, %cst_19 {dimension_numbers = #tpu.dot_dimension_numbers<[1], [0], [0], [1], [0, 0, 1, 1], [], []>} : vector<8x8xbf16>, vector<8x16xbf16>, vector<8x16xf32> -> vector<8x16xf32>
    %36 = arith.truncf %35 : vector<8x16xf32> to vector<8x16xbf16>
    %c0_20 = arith.constant 0 : index
    %c0_21 = arith.constant 0 : index
    %c0_22 = arith.constant 0 : index
    %37 = vector.load %arg8[%c0_20, %c0_21, %c0_22] : memref<1x8x128xbf16, #tpu.memory_space<vmem>>, vector<1x8x16xbf16>
    %38 = vector.shape_cast %37 : vector<1x8x16xbf16> to vector<8x16xbf16>
    %39 = vector.shape_cast %36 : vector<8x16xbf16> to vector<1x8x16xbf16>
    tpu.vector_store %arg8[%c0_20, %c0_21, %c0_22], %39 {strides = array<i32>} : memref<1x8x128xbf16, #tpu.memory_space<vmem>>, vector<1x8x16xbf16>,
    %40 = vector.extract_strided_slice %17 {offsets = [0, 16], sizes = [8, 16], strides = [1, 1]} : vector<8x128xbf16> to vector<8x16xbf16>
    %41 = vector.extract_strided_slice %11 {offsets = [0, 32], sizes = [8, 16], strides = [1, 1]} : vector<8x256xbf16> to vector<8x16xbf16>
    %42 = vector.extract_strided_slice %11 {offsets = [0, 48], sizes = [8, 16], strides = [1, 1]} : vector<8x256xbf16> to vector<8x16xbf16>
    %cst_23 = arith.constant dense<0.000000e+00> : vector<8x8xf32>
    %43 = tpu.matmul %40, %41, %cst_23 {dimension_numbers = #tpu.dot_dimension_numbers<[1], [1], [0], [0], [0, 0, 1, 0], [], []>} : vector<8x16xbf16>, vector<8x16xbf16>, vector<8x8xf32> -> vector<8x8xf32>
    %44 = arith.addf %43, %18 : vector<8x8xf32>
    %cst_24 = arith.constant dense<0xFF800000> : vector<8xf32>
    %45 = vector.multi_reduction <maximumf>, %44, %cst_24 [1] : vector<8x8xf32> to vector<8xf32>
    %46 = vector.shape_cast %45 : vector<8xf32> to vector<8x1xf32>
    %47 = vector.broadcast %46 : vector<8x1xf32> to vector<8x8xf32>
    %48 = arith.subf %44, %47 : vector<8x8xf32>
    %49 = math.exp %48 : vector<8x8xf32>
    %cst_25 = arith.constant dense<0.000000e+00> : vector<8xf32>
    %50 = vector.multi_reduction <add>, %49, %cst_25 [1] : vector<8x8xf32> to vector<8xf32>
    %51 = vector.shape_cast %50 : vector<8xf32> to vector<8x1xf32>
    %52 = tpu.reciprocal %51 {approx = true} : vector<8x1xf32> -> vector<8x1xf32>
    %53 = vector.broadcast %52 : vector<8x1xf32> to vector<8x8xf32>
    %54 = arith.mulf %49, %53 : vector<8x8xf32>
    %55 = arith.truncf %54 : vector<8x8xf32> to vector<8x8xbf16>
    %cst_26 = arith.constant dense<0.000000e+00> : vector<8x16xf32>
    %56 = tpu.matmul %55, %42, %cst_26 {dimension_numbers = #tpu.dot_dimension_numbers<[1], [0], [0], [1], [0, 0, 1, 1], [], []>} : vector<8x8xbf16>, vector<8x16xbf16>, vector<8x16xf32> -> vector<8x16xf32>
    %57 = arith.truncf %56 : vector<8x16xf32> to vector<8x16xbf16>
    %c0_27 = arith.constant 0 : index
    %c0_28 = arith.constant 0 : index
    %c16 = arith.constant 16 : index
    %58 = vector.load %arg8[%c0_27, %c0_28, %c16] : memref<1x8x128xbf16, #tpu.memory_space<vmem>>, vector<1x8x16xbf16>
    %59 = vector.shape_cast %58 : vector<1x8x16xbf16> to vector<8x16xbf16>
    %60 = vector.shape_cast %57 : vector<8x16xbf16> to vector<1x8x16xbf16>
    tpu.vector_store %arg8[%c0_27, %c0_28, %c16], %60 {strides = array<i32>} : memref<1x8x128xbf16, #tpu.memory_space<vmem>>, vector<1x8x16xbf16>,
    %61 = vector.extract_strided_slice %17 {offsets = [0, 32], sizes = [8, 16], strides = [1, 1]} : vector<8x128xbf16> to vector<8x16xbf16>
    %62 = vector.extract_strided_slice %11 {offsets = [0, 64], sizes = [8, 16], strides = [1, 1]} : vector<8x256xbf16> to vector<8x16xbf16>
    %63 = vector.extract_strided_slice %11 {offsets = [0, 80], sizes = [8, 16], strides = [1, 1]} : vector<8x256xbf16> to vector<8x16xbf16>
    %cst_29 = arith.constant dense<0.000000e+00> : vector<8x8xf32>
    %64 = tpu.matmul %61, %62, %cst_29 {dimension_numbers = #tpu.dot_dimension_numbers<[1], [1], [0], [0], [0, 0, 1, 0], [], []>} : vector<8x16xbf16>, vector<8x16xbf16>, vector<8x8xf32> -> vector<8x8xf32>
    %65 = arith.addf %64, %18 : vector<8x8xf32>
    %cst_30 = arith.constant dense<0xFF800000> : vector<8xf32>
    %66 = vector.multi_reduction <maximumf>, %65, %cst_30 [1] : vector<8x8xf32> to vector<8xf32>
    %67 = vector.shape_cast %66 : vector<8xf32> to vector<8x1xf32>
    %68 = vector.broadcast %67 : vector<8x1xf32> to vector<8x8xf32>
    %69 = arith.subf %65, %68 : vector<8x8xf32>
    %70 = math.exp %69 : vector<8x8xf32>
    %cst_31 = arith.constant dense<0.000000e+00> : vector<8xf32>
    %71 = vector.multi_reduction <add>, %70, %cst_31 [1] : vector<8x8xf32> to vector<8xf32>
    %72 = vector.shape_cast %71 : vector<8xf32> to vector<8x1xf32>
    %73 = tpu.reciprocal %72 {approx = true} : vector<8x1xf32> -> vector<8x1xf32>
    %74 = vector.broadcast %73 : vector<8x1xf32> to vector<8x8xf32>
    %75 = arith.mulf %70, %74 : vector<8x8xf32>
    %76 = arith.truncf %75 : vector<8x8xf32> to vector<8x8xbf16>
    %cst_32 = arith.constant dense<0.000000e+00> : vector<8x16xf32>
    %77 = tpu.matmul %76, %63, %cst_32 {dimension_numbers = #tpu.dot_dimension_numbers<[1], [0], [0], [1], [0, 0, 1, 1], [], []>} : vector<8x8xbf16>, vector<8x16xbf16>, vector<8x16xf32> -> vector<8x16xf32>
    %78 = arith.truncf %77 : vector<8x16xf32> to vector<8x16xbf16>
    %c0_33 = arith.constant 0 : index
    %c0_34 = arith.constant 0 : index
    %c32 = arith.constant 32 : index
    %79 = vector.load %arg8[%c0_33, %c0_34, %c32] : memref<1x8x128xbf16, #tpu.memory_space<vmem>>, vector<1x8x16xbf16>
    %80 = vector.shape_cast %79 : vector<1x8x16xbf16> to vector<8x16xbf16>
    %81 = vector.shape_cast %78 : vector<8x16xbf16> to vector<1x8x16xbf16>
    tpu.vector_store %arg8[%c0_33, %c0_34, %c32], %81 {strides = array<i32>} : memref<1x8x128xbf16, #tpu.memory_space<vmem>>, vector<1x8x16xbf16>,
    %82 = vector.extract_strided_slice %17 {offsets = [0, 48], sizes = [8, 16], strides = [1, 1]} : vector<8x128xbf16> to vector<8x16xbf16>
    %83 = vector.extract_strided_slice %11 {offsets = [0, 96], sizes = [8, 16], strides = [1, 1]} : vector<8x256xbf16> to vector<8x16xbf16>
    %84 = vector.extract_strided_slice %11 {offsets = [0, 112], sizes = [8, 16], strides = [1, 1]} : vector<8x256xbf16> to vector<8x16xbf16>
    %cst_35 = arith.constant dense<0.000000e+00> : vector<8x8xf32>
    %85 = tpu.matmul %82, %83, %cst_35 {dimension_numbers = #tpu.dot_dimension_numbers<[1], [1], [0], [0], [0, 0, 1, 0], [], []>} : vector<8x16xbf16>, vector<8x16xbf16>, vector<8x8xf32> -> vector<8x8xf32>
    %86 = arith.addf %85, %18 : vector<8x8xf32>
    %cst_36 = arith.constant dense<0xFF800000> : vector<8xf32>
    %87 = vector.multi_reduction <maximumf>, %86, %cst_36 [1] : vector<8x8xf32> to vector<8xf32>
    %88 = vector.shape_cast %87 : vector<8xf32> to vector<8x1xf32>
    %89 = vector.broadcast %88 : vector<8x1xf32> to vector<8x8xf32>
    %90 = arith.subf %86, %89 : vector<8x8xf32>
    %91 = math.exp %90 : vector<8x8xf32>
    %cst_37 = arith.constant dense<0.000000e+00> : vector<8xf32>
    %92 = vector.multi_reduction <add>, %91, %cst_37 [1] : vector<8x8xf32> to vector<8xf32>
    %93 = vector.shape_cast %92 : vector<8xf32> to vector<8x1xf32>
    %94 = tpu.reciprocal %93 {approx = true} : vector<8x1xf32> -> vector<8x1xf32>
    %95 = vector.broadcast %94 : vector<8x1xf32> to vector<8x8xf32>
    %96 = arith.mulf %91, %95 : vector<8x8xf32>
    %97 = arith.truncf %96 : vector<8x8xf32> to vector<8x8xbf16>
    %cst_38 = arith.constant dense<0.000000e+00> : vector<8x16xf32>
    %98 = tpu.matmul %97, %84, %cst_38 {dimension_numbers = #tpu.dot_dimension_numbers<[1], [0], [0], [1], [0, 0, 1, 1], [], []>} : vector<8x8xbf16>, vector<8x16xbf16>, vector<8x16xf32> -> vector<8x16xf32>
    %99 = arith.truncf %98 : vector<8x16xf32> to vector<8x16xbf16>
    %c0_39 = arith.constant 0 : index
    %c0_40 = arith.constant 0 : index
    %c48 = arith.constant 48 : index
    %100 = vector.load %arg8[%c0_39, %c0_40, %c48] : memref<1x8x128xbf16, #tpu.memory_space<vmem>>, vector<1x8x16xbf16>
    %101 = vector.shape_cast %100 : vector<1x8x16xbf16> to vector<8x16xbf16>
    %102 = vector.shape_cast %99 : vector<8x16xbf16> to vector<1x8x16xbf16>
    tpu.vector_store %arg8[%c0_39, %c0_40, %c48], %102 {strides = array<i32>} : memref<1x8x128xbf16, #tpu.memory_space<vmem>>, vector<1x8x16xbf16>,
    %103 = vector.extract_strided_slice %17 {offsets = [0, 64], sizes = [8, 16], strides = [1, 1]} : vector<8x128xbf16> to vector<8x16xbf16>
    %104 = vector.extract_strided_slice %11 {offsets = [0, 128], sizes = [8, 16], strides = [1, 1]} : vector<8x256xbf16> to vector<8x16xbf16>
    %105 = vector.extract_strided_slice %11 {offsets = [0, 144], sizes = [8, 16], strides = [1, 1]} : vector<8x256xbf16> to vector<8x16xbf16>
    %cst_41 = arith.constant dense<0.000000e+00> : vector<8x8xf32>
    %106 = tpu.matmul %103, %104, %cst_41 {dimension_numbers = #tpu.dot_dimension_numbers<[1], [1], [0], [0], [0, 0, 1, 0], [], []>} : vector<8x16xbf16>, vector<8x16xbf16>, vector<8x8xf32> -> vector<8x8xf32>
    %107 = arith.addf %106, %18 : vector<8x8xf32>
    %cst_42 = arith.constant dense<0xFF800000> : vector<8xf32>
    %108 = vector.multi_reduction <maximumf>, %107, %cst_42 [1] : vector<8x8xf32> to vector<8xf32>
    %109 = vector.shape_cast %108 : vector<8xf32> to vector<8x1xf32>
    %110 = vector.broadcast %109 : vector<8x1xf32> to vector<8x8xf32>
    %111 = arith.subf %107, %110 : vector<8x8xf32>
    %112 = math.exp %111 : vector<8x8xf32>
    %cst_43 = arith.constant dense<0.000000e+00> : vector<8xf32>
    %113 = vector.multi_reduction <add>, %112, %cst_43 [1] : vector<8x8xf32> to vector<8xf32>
    %114 = vector.shape_cast %113 : vector<8xf32> to vector<8x1xf32>
    %115 = tpu.reciprocal %114 {approx = true} : vector<8x1xf32> -> vector<8x1xf32>
    %116 = vector.broadcast %115 : vector<8x1xf32> to vector<8x8xf32>
    %117 = arith.mulf %112, %116 : vector<8x8xf32>
    %118 = arith.truncf %117 : vector<8x8xf32> to vector<8x8xbf16>
    %cst_44 = arith.constant dense<0.000000e+00> : vector<8x16xf32>
    %119 = tpu.matmul %118, %105, %cst_44 {dimension_numbers = #tpu.dot_dimension_numbers<[1], [0], [0], [1], [0, 0, 1, 1], [], []>} : vector<8x8xbf16>, vector<8x16xbf16>, vector<8x16xf32> -> vector<8x16xf32>
    %120 = arith.truncf %119 : vector<8x16xf32> to vector<8x16xbf16>
    %c0_45 = arith.constant 0 : index
    %c0_46 = arith.constant 0 : index
    %c64 = arith.constant 64 : index
    %121 = vector.load %arg8[%c0_45, %c0_46, %c64] : memref<1x8x128xbf16, #tpu.memory_space<vmem>>, vector<1x8x16xbf16>
    %122 = vector.shape_cast %121 : vector<1x8x16xbf16> to vector<8x16xbf16>
    %123 = vector.shape_cast %120 : vector<8x16xbf16> to vector<1x8x16xbf16>
    tpu.vector_store %arg8[%c0_45, %c0_46, %c64], %123 {strides = array<i32>} : memref<1x8x128xbf16, #tpu.memory_space<vmem>>, vector<1x8x16xbf16>,
    %124 = vector.extract_strided_slice %17 {offsets = [0, 80], sizes = [8, 16], strides = [1, 1]} : vector<8x128xbf16> to vector<8x16xbf16>
    %125 = vector.extract_strided_slice %11 {offsets = [0, 160], sizes = [8, 16], strides = [1, 1]} : vector<8x256xbf16> to vector<8x16xbf16>
    %126 = vector.extract_strided_slice %11 {offsets = [0, 176], sizes = [8, 16], strides = [1, 1]} : vector<8x256xbf16> to vector<8x16xbf16>
    %cst_47 = arith.constant dense<0.000000e+00> : vector<8x8xf32>
    %127 = tpu.matmul %124, %125, %cst_47 {dimension_numbers = #tpu.dot_dimension_numbers<[1], [1], [0], [0], [0, 0, 1, 0], [], []>} : vector<8x16xbf16>, vector<8x16xbf16>, vector<8x8xf32> -> vector<8x8xf32>
    %128 = arith.addf %127, %18 : vector<8x8xf32>
    %cst_48 = arith.constant dense<0xFF800000> : vector<8xf32>
    %129 = vector.multi_reduction <maximumf>, %128, %cst_48 [1] : vector<8x8xf32> to vector<8xf32>
    %130 = vector.shape_cast %129 : vector<8xf32> to vector<8x1xf32>
    %131 = vector.broadcast %130 : vector<8x1xf32> to vector<8x8xf32>
    %132 = arith.subf %128, %131 : vector<8x8xf32>
    %133 = math.exp %132 : vector<8x8xf32>
    %cst_49 = arith.constant dense<0.000000e+00> : vector<8xf32>
    %134 = vector.multi_reduction <add>, %133, %cst_49 [1] : vector<8x8xf32> to vector<8xf32>
    %135 = vector.shape_cast %134 : vector<8xf32> to vector<8x1xf32>
    %136 = tpu.reciprocal %135 {approx = true} : vector<8x1xf32> -> vector<8x1xf32>
    %137 = vector.broadcast %136 : vector<8x1xf32> to vector<8x8xf32>
    %138 = arith.mulf %133, %137 : vector<8x8xf32>
    %139 = arith.truncf %138 : vector<8x8xf32> to vector<8x8xbf16>
    %cst_50 = arith.constant dense<0.000000e+00> : vector<8x16xf32>
    %140 = tpu.matmul %139, %126, %cst_50 {dimension_numbers = #tpu.dot_dimension_numbers<[1], [0], [0], [1], [0, 0, 1, 1], [], []>} : vector<8x8xbf16>, vector<8x16xbf16>, vector<8x16xf32> -> vector<8x16xf32>
    %141 = arith.truncf %140 : vector<8x16xf32> to vector<8x16xbf16>
    %c0_51 = arith.constant 0 : index
    %c0_52 = arith.constant 0 : index
    %c80 = arith.constant 80 : index
    %142 = vector.load %arg8[%c0_51, %c0_52, %c80] : memref<1x8x128xbf16, #tpu.memory_space<vmem>>, vector<1x8x16xbf16>
    %143 = vector.shape_cast %142 : vector<1x8x16xbf16> to vector<8x16xbf16>
    %144 = vector.shape_cast %141 : vector<8x16xbf16> to vector<1x8x16xbf16>
    tpu.vector_store %arg8[%c0_51, %c0_52, %c80], %144 {strides = array<i32>} : memref<1x8x128xbf16, #tpu.memory_space<vmem>>, vector<1x8x16xbf16>,
    %145 = vector.extract_strided_slice %17 {offsets = [0, 96], sizes = [8, 16], strides = [1, 1]} : vector<8x128xbf16> to vector<8x16xbf16>
    %146 = vector.extract_strided_slice %11 {offsets = [0, 192], sizes = [8, 16], strides = [1, 1]} : vector<8x256xbf16> to vector<8x16xbf16>
    %147 = vector.extract_strided_slice %11 {offsets = [0, 208], sizes = [8, 16], strides = [1, 1]} : vector<8x256xbf16> to vector<8x16xbf16>
    %cst_53 = arith.constant dense<0.000000e+00> : vector<8x8xf32>
    %148 = tpu.matmul %145, %146, %cst_53 {dimension_numbers = #tpu.dot_dimension_numbers<[1], [1], [0], [0], [0, 0, 1, 0], [], []>} : vector<8x16xbf16>, vector<8x16xbf16>, vector<8x8xf32> -> vector<8x8xf32>
    %149 = arith.addf %148, %18 : vector<8x8xf32>
    %cst_54 = arith.constant dense<0xFF800000> : vector<8xf32>
    %150 = vector.multi_reduction <maximumf>, %149, %cst_54 [1] : vector<8x8xf32> to vector<8xf32>
    %151 = vector.shape_cast %150 : vector<8xf32> to vector<8x1xf32>
    %152 = vector.broadcast %151 : vector<8x1xf32> to vector<8x8xf32>
    %153 = arith.subf %149, %152 : vector<8x8xf32>
    %154 = math.exp %153 : vector<8x8xf32>
    %cst_55 = arith.constant dense<0.000000e+00> : vector<8xf32>
    %155 = vector.multi_reduction <add>, %154, %cst_55 [1] : vector<8x8xf32> to vector<8xf32>
    %156 = vector.shape_cast %155 : vector<8xf32> to vector<8x1xf32>
    %157 = tpu.reciprocal %156 {approx = true} : vector<8x1xf32> -> vector<8x1xf32>
    %158 = vector.broadcast %157 : vector<8x1xf32> to vector<8x8xf32>
    %159 = arith.mulf %154, %158 : vector<8x8xf32>
    %160 = arith.truncf %159 : vector<8x8xf32> to vector<8x8xbf16>
    %cst_56 = arith.constant dense<0.000000e+00> : vector<8x16xf32>
    %161 = tpu.matmul %160, %147, %cst_56 {dimension_numbers = #tpu.dot_dimension_numbers<[1], [0], [0], [1], [0, 0, 1, 1], [], []>} : vector<8x8xbf16>, vector<8x16xbf16>, vector<8x16xf32> -> vector<8x16xf32>
    %162 = arith.truncf %161 : vector<8x16xf32> to vector<8x16xbf16>
    %c0_57 = arith.constant 0 : index
    %c0_58 = arith.constant 0 : index
    %c96 = arith.constant 96 : index
    %163 = vector.load %arg8[%c0_57, %c0_58, %c96] : memref<1x8x128xbf16, #tpu.memory_space<vmem>>, vector<1x8x16xbf16>
    %164 = vector.shape_cast %163 : vector<1x8x16xbf16> to vector<8x16xbf16>
    %165 = vector.shape_cast %162 : vector<8x16xbf16> to vector<1x8x16xbf16>
    tpu.vector_store %arg8[%c0_57, %c0_58, %c96], %165 {strides = array<i32>} : memref<1x8x128xbf16, #tpu.memory_space<vmem>>, vector<1x8x16xbf16>,
    %166 = vector.extract_strided_slice %17 {offsets = [0, 112], sizes = [8, 16], strides = [1, 1]} : vector<8x128xbf16> to vector<8x16xbf16>
    %167 = vector.extract_strided_slice %11 {offsets = [0, 224], sizes = [8, 16], strides = [1, 1]} : vector<8x256xbf16> to vector<8x16xbf16>
    %168 = vector.extract_strided_slice %11 {offsets = [0, 240], sizes = [8, 16], strides = [1, 1]} : vector<8x256xbf16> to vector<8x16xbf16>
    %cst_59 = arith.constant dense<0.000000e+00> : vector<8x8xf32>
    %169 = tpu.matmul %166, %167, %cst_59 {dimension_numbers = #tpu.dot_dimension_numbers<[1], [1], [0], [0], [0, 0, 1, 0], [], []>} : vector<8x16xbf16>, vector<8x16xbf16>, vector<8x8xf32> -> vector<8x8xf32>
    %170 = arith.addf %169, %18 : vector<8x8xf32>
    %cst_60 = arith.constant dense<0xFF800000> : vector<8xf32>
    %171 = vector.multi_reduction <maximumf>, %170, %cst_60 [1] : vector<8x8xf32> to vector<8xf32>
    %172 = vector.shape_cast %171 : vector<8xf32> to vector<8x1xf32>
    %173 = vector.broadcast %172 : vector<8x1xf32> to vector<8x8xf32>
    %174 = arith.subf %170, %173 : vector<8x8xf32>
    %175 = math.exp %174 : vector<8x8xf32>
    %cst_61 = arith.constant dense<0.000000e+00> : vector<8xf32>
    %176 = vector.multi_reduction <add>, %175, %cst_61 [1] : vector<8x8xf32> to vector<8xf32>
    %177 = vector.shape_cast %176 : vector<8xf32> to vector<8x1xf32>
    %178 = tpu.reciprocal %177 {approx = true} : vector<8x1xf32> -> vector<8x1xf32>
    %179 = vector.broadcast %178 : vector<8x1xf32> to vector<8x8xf32>
    %180 = arith.mulf %175, %179 : vector<8x8xf32>
    %181 = arith.truncf %180 : vector<8x8xf32> to vector<8x8xbf16>
    %cst_62 = arith.constant dense<0.000000e+00> : vector<8x16xf32>
    %182 = tpu.matmul %181, %168, %cst_62 {dimension_numbers = #tpu.dot_dimension_numbers<[1], [0], [0], [1], [0, 0, 1, 1], [], []>} : vector<8x8xbf16>, vector<8x16xbf16>, vector<8x16xf32> -> vector<8x16xf32>
    %183 = arith.truncf %182 : vector<8x16xf32> to vector<8x16xbf16>
    %c0_63 = arith.constant 0 : index
    %c0_64 = arith.constant 0 : index
    %c112 = arith.constant 112 : index
    %184 = vector.load %arg8[%c0_63, %c0_64, %c112] : memref<1x8x128xbf16, #tpu.memory_space<vmem>>, vector<1x8x16xbf16>
    %185 = vector.shape_cast %184 : vector<1x8x16xbf16> to vector<8x16xbf16>
    %186 = vector.shape_cast %183 : vector<8x16xbf16> to vector<1x8x16xbf16>
    tpu.vector_store %arg8[%c0_63, %c0_64, %c112], %186 {strides = array<i32>} : memref<1x8x128xbf16, #tpu.memory_space<vmem>>, vector<1x8x16xbf16>,
    return
  }
  func.func @transform_0(%arg0: i32) -> (i32, i32, i32) {
    %c0_i32 = arith.constant 0 : i32
    %c0_i32_0 = arith.constant 0 : i32
    %c0_i32_1 = arith.constant 0 : i32
    return %arg0, %c0_i32, %c0_i32_0 : i32, i32, i32
  }
  func.func @transform_1(%arg0: i32) -> (i32, i32, i32) {
    %c0_i32 = arith.constant 0 : i32
    %c0_i32_0 = arith.constant 0 : i32
    %c0_i32_1 = arith.constant 0 : i32
    return %arg0, %c0_i32, %c0_i32_0 : i32, i32, i32
  }
  func.func @transform_2(%arg0: i32) -> (i32, i32) {
    %c0_i32 = arith.constant 0 : i32
    %c0_i32_0 = arith.constant 0 : i32
    %c0_i32_1 = arith.constant 0 : i32
    return %c0_i32, %c0_i32_0 : i32, i32
  }
  func.func @transform_3(%arg0: i32) -> (i32, i32) {
    %c0_i32 = arith.constant 0 : i32
    %c0_i32_0 = arith.constant 0 : i32
    %c0_i32_1 = arith.constant 0 : i32
    return %c0_i32, %c0_i32_0 : i32, i32
  }
  func.func @transform_4(%arg0: i32) -> (i32, i32) {
    %c0_i32 = arith.constant 0 : i32
    %c0_i32_0 = arith.constant 0 : i32
    %c0_i32_1 = arith.constant 0 : i32
    return %c0_i32, %c0_i32_0 : i32, i32
  }
  func.func @transform_5(%arg0: i32) -> (i32, i32) {
    %c0_i32 = arith.constant 0 : i32
    %c0_i32_0 = arith.constant 0 : i32
    %c0_i32_1 = arith.constant 0 : i32
    return %c0_i32, %c0_i32_0 : i32, i32
  }
  func.func @transform_6(%arg0: i32) -> (i32, i32) {
    %c0_i32 = arith.constant 0 : i32
    %c0_i32_0 = arith.constant 0 : i32
    %c0_i32_1 = arith.constant 0 : i32
    return %c0_i32, %c0_i32_0 : i32, i32
  }
  func.func @transform_7(%arg0: i32) -> (i32, i32, i32) {
    %c0_i32 = arith.constant 0 : i32
    %c0_i32_0 = arith.constant 0 : i32
    %c0_i32_1 = arith.constant 0 : i32
    return %arg0, %c0_i32, %c0_i32_0 : i32, i32, i32
  }
}

</mosaic_0001>

<llo_original>
// kernel: tpu_custom_call.1
$region0: #{tpu_custom_call.1}
  #allocation0 [shape = 'u32[]', space=smem, size = 0x4, offset = 0x4, fixed_abs, tag = 'smem constant byte address 0x4 - core index']
  #allocation1 [shape = 'u32[144,128]{1,0:T(1,128)}', space=vmem, size = 0x12000, scoped, tag = 'internal scratch']
  %s0 = inlined_call_operand.hbm [shape: f32[2,8,128], index: 0, kind: input, shape index: {}]
  %s1 = inlined_call_operand.hbm [shape: f32[2,8,128], index: 1, kind: input, shape index: {}]
  %s2 = inlined_call_operand.hbm [shape: bf16[128,256], index: 2, kind: input, shape index: {}]
  %s3 = inlined_call_operand.vmem [shape: f32[1,256], index: 3, kind: input, shape index: {}]
  %s4 = inlined_call_operand.hbm [shape: bf16[128,128], index: 4, kind: input, shape index: {}]
  %s5 = inlined_call_operand.hbm [shape: f32[1,128], index: 5, kind: input, shape index: {}]
  %s6 = inlined_call_operand.vmem [shape: f32[8,8], index: 6, kind: input, shape index: {}]
  %s7 = inlined_call_operand.hbm [shape: bf16[2,8,128], index: 7, kind: output, shape index: {}]
  %s8 = sld [smem:[#allocation0]]
  $region81: #{tpu_custom_call.1} parent=0
    _
  %s10 = ssub.s32 1, %s8
  %s11 = scalar_select 0, %s10, %s8
  $region1: #{tpu_custom_call.1} parent=0
    #allocation2 [shape = 'u8[8192]{0}', space=vmem, size = 0x2000, scoped, tag = 'input window, operand 0']
    #allocation3 [shape = 's32[2]{0}', space=sflag, size = 0x8, scoped, tag = 'scoped memory for tpu_custom_call.1']
    #allocation4 [shape = 's32[2]{0}', space=sflag, size = 0x8, scoped, tag = 'scoped memory for tpu_custom_call.1']
    #allocation5 [shape = 'u8[8192]{0}', space=vmem, size = 0x2000, scoped, tag = 'input window, operand 1']
    #allocation6 [shape = 's32[2]{0}', space=sflag, size = 0x8, scoped, tag = 'scoped memory for tpu_custom_call.1']
    #allocation7 [shape = 'u8[65536]{0}', space=vmem, size = 0x10000, scoped, tag = 'input window, operand 2, single buffered']
    #allocation8 [shape = 'u8[32768]{0}', space=vmem, size = 0x8000, scoped, tag = 'input window, operand 4, single buffered']
    #allocation9 [shape = 's32[1]{0}', space=sflag, size = 0x4, scoped, tag = 'scoped memory for tpu_custom_call.1']
    #allocation10 [shape = 'u8[512]{0}', space=vmem, size = 0x400, scoped, tag = 'input window, operand 5, single buffered']
    #allocation11 [shape = 'u8[4096]{0}', space=vmem, size = 0x1000, scoped, tag = 'output window, operand 0']
    %12 = vsyncpa [#allocation3], 0
    %s13 = scalar_lea.sflag [#allocation3], 1
    %14 = vsyncpa %s13, 0
    %15 = vsyncpa [#allocation6], 0
    %s16 = scalar_lea.sflag [#allocation6], 1
    %17 = vsyncpa %s16, 0
    %18 = vsyncpa [#allocation9], 0
    %19 = vsyncpa [#allocation4], 0
    %s20 = scalar_lea.sflag [#allocation4], 1
    %21 = vsyncpa %s20, 0
    loop: start=0, step=1, limit=4
    $region2: #{tpu_custom_call.1} parent=1 // loop_pre_header
      _
    $region3: #{tpu_custom_call.1} parent=1 // loop_header
      %s23 = sphi 0, %s27
      %p24 = scmp.ge.s32.totalorder %s23, 4
      %s33 = sphi 0, %s35
      %s36 = sphi 0, %s33
      %s37 = sphi 0, %s36
      %s53 = sphi 0, %s37
      %s59 = sphi 0, %s61
      %s62 = sphi 0, %s59
      %s63 = sphi 0, %s62
      %s79 = sphi 0, %s63
      %s83 = sphi 0, %s83
      %s85 = sphi 0, %s83
      %s86 = sphi 0, %s85
      %s100 = sphi 0, %s86
      %s104 = sphi 0, %s104
      %s106 = sphi 0, %s104
      %s107 = sphi 0, %s106
      %s121 = sphi 0, %s107
      %s125 = sphi 0, %s125
      %s127 = sphi 0, %s125
      %s128 = sphi 0, %s127
      %s142 = sphi 0, %s128
      %s146 = sphi 0, %s146
      %s148 = sphi 0, %s146
      %s149 = sphi 0, %s148
      %s163 = sphi 0, %s149
      %s167 = sphi 0, %s167
      %s169 = sphi 0, %s167
      %s170 = sphi 0, %s169
      %s184 = sphi 0, %s170
      %s190 = sphi 0, %s192
      %s193 = sphi 0, %s190
      %s194 = sphi 0, %s193
      %s210 = sphi 0, %s194
    $region4: #{tpu_custom_call.1} parent=1 // loop_header_branch
      %26 = sbr.rel (%p24) target = $region8
    $region5: #{tpu_custom_call.1} parent=1 // loop_body
      %s28 = ssub.s32 %s23, 1
      %s29 = ssub.s32 %s23, 2
      %s30 = sadd.s32 %s23, 1
      %s31 = ssub.s32 %s23, %s30
      %p32 = scmp.eq.s32.totalorder %s31, 0
      %s34 = sadd.s32 %s33, 1
      %s35 = scalar_select %p32, %s33, %s34
      %p38 = pneg %p32
      %p39 = scmp.eq.s32.totalorder %s23, 1
      %p40 = por %p38, %p39
      %p41 = scmp.ne.s32.totalorder %s33, %s36
      %p42 = scmp.eq.s32.totalorder %s23, 0
      %p43 = por %p41, %p42
      %p44 = scmp.ne.s32.totalorder %s33, %s36
      %p45 = scmp.eq.s32.totalorder %s28, 1
      %p46 = por %p44, %p45
      %p47 = scmp.ne.s32.totalorder %s36, %s37
      %p48 = scmp.eq.s32.totalorder %s28, 0
      %p49 = por %p47, %p48
      %p50 = scmp.ne.s32.totalorder %s36, %s37
      %p51 = scmp.eq.s32.totalorder %s29, 1
      %p52 = por %p50, %p51
      %p54 = scmp.ne.s32.totalorder %s37, %s53
      %p55 = scmp.eq.s32.totalorder %s29, 0
      %p56 = por %p54, %p55
      %s57 = ssub.s32 %s23, %s30
      %p58 = scmp.eq.s32.totalorder %s57, 0
      %s60 = sadd.s32 %s59, 1
      %s61 = scalar_select %p58, %s59, %s60
      %p64 = pneg %p58
      %p65 = scmp.eq.s32.totalorder %s23, 1
      %p66 = por %p64, %p65
      %p67 = scmp.ne.s32.totalorder %s59, %s62
      %p68 = scmp.eq.s32.totalorder %s23, 0
      %p69 = por %p67, %p68
      %p70 = scmp.ne.s32.totalorder %s59, %s62
      %p71 = scmp.eq.s32.totalorder %s28, 1
      %p72 = por %p70, %p71
      %p73 = scmp.ne.s32.totalorder %s62, %s63
      %p74 = scmp.eq.s32.totalorder %s28, 0
      %p75 = por %p73, %p74
      %p76 = scmp.ne.s32.totalorder %s62, %s63
      %p77 = scmp.eq.s32.totalorder %s29, 1
      %p78 = por %p76, %p77
      %p80 = scmp.ne.s32.totalorder %s63, %s79
      %p81 = scmp.eq.s32.totalorder %s29, 0
      %p82 = por %p80, %p81
      %s84 = sadd.s32 %s83, 1
      %p87 = scmp.eq.s32.totalorder %s23, 1
      %p88 = scmp.ne.s32.totalorder %s83, %s85
      %p89 = scmp.eq.s32.totalorder %s23, 0
      %p90 = por %p88, %p89
      %p91 = scmp.ne.s32.totalorder %s83, %s85
      %p92 = scmp.eq.s32.totalorder %s28, 1
      %p93 = por %p91, %p92
      %p94 = scmp.ne.s32.totalorder %s85, %s86
      %p95 = scmp.eq.s32.totalorder %s28, 0
      %p96 = por %p94, %p95
      %p97 = scmp.ne.s32.totalorder %s85, %s86
      %p98 = scmp.eq.s32.totalorder %s29, 1
      %p99 = por %p97, %p98
      %p101 = scmp.ne.s32.totalorder %s86, %s100
      %p102 = scmp.eq.s32.totalorder %s29, 0
      %p103 = por %p101, %p102
      %s105 = sadd.s32 %s104, 1
      %p108 = scmp.eq.s32.totalorder %s23, 1
      %p109 = scmp.ne.s32.totalorder %s104, %s106
      %p110 = scmp.eq.s32.totalorder %s23, 0
      %p111 = por %p109, %p110
      %p112 = scmp.ne.s32.totalorder %s104, %s106
      %p113 = scmp.eq.s32.totalorder %s28, 1
      %p114 = por %p112, %p113
      %p115 = scmp.ne.s32.totalorder %s106, %s107
      %p116 = scmp.eq.s32.totalorder %s28, 0
      %p117 = por %p115, %p116
      %p118 = scmp.ne.s32.totalorder %s106, %s107
      %p119 = scmp.eq.s32.totalorder %s29, 1
      %p120 = por %p118, %p119
      %p122 = scmp.ne.s32.totalorder %s107, %s121
      %p123 = scmp.eq.s32.totalorder %s29, 0
      %p124 = por %p122, %p123
      %s126 = sadd.s32 %s125, 1
      %p129 = scmp.eq.s32.totalorder %s23, 1
      %p130 = scmp.ne.s32.totalorder %s125, %s127
      %p131 = scmp.eq.s32.totalorder %s23, 0
      %p132 = por %p130, %p131
      %p133 = scmp.ne.s32.totalorder %s125, %s127
      %p134 = scmp.eq.s32.totalorder %s28, 1
      %p135 = por %p133, %p134
      %p136 = scmp.ne.s32.totalorder %s127, %s128
      %p137 = scmp.eq.s32.totalorder %s28, 0
      %p138 = por %p136, %p137
      %p139 = scmp.ne.s32.totalorder %s127, %s128
      %p140 = scmp.eq.s32.totalorder %s29, 1
      %p141 = por %p139, %p140
      %p143 = scmp.ne.s32.totalorder %s128, %s142
      %p144 = scmp.eq.s32.totalorder %s29, 0
      %p145 = por %p143, %p144
      %s147 = sadd.s32 %s146, 1
      %p150 = scmp.eq.s32.totalorder %s23, 1
      %p151 = scmp.ne.s32.totalorder %s146, %s148
      %p152 = scmp.eq.s32.totalorder %s23, 0
      %p153 = por %p151, %p152
      %p154 = scmp.ne.s32.totalorder %s146, %s148
      %p155 = scmp.eq.s32.totalorder %s28, 1
      %p156 = por %p154, %p155
      %p157 = scmp.ne.s32.totalorder %s148, %s149
      %p158 = scmp.eq.s32.totalorder %s28, 0
      %p159 = por %p157, %p158
      %p160 = scmp.ne.s32.totalorder %s148, %s149
      %p161 = scmp.eq.s32.totalorder %s29, 1
      %p162 = por %p160, %p161
      %p164 = scmp.ne.s32.totalorder %s149, %s163
      %p165 = scmp.eq.s32.totalorder %s29, 0
      %p166 = por %p164, %p165
      %s168 = sadd.s32 %s167, 1
      %p171 = scmp.eq.s32.totalorder %s23, 1
      %p172 = scmp.ne.s32.totalorder %s167, %s169
      %p173 = scmp.eq.s32.totalorder %s23, 0
      %p174 = por %p172, %p173
      %p175 = scmp.ne.s32.totalorder %s167, %s169
      %p176 = scmp.eq.s32.totalorder %s28, 1
      %p177 = por %p175, %p176
      %p178 = scmp.ne.s32.totalorder %s169, %s170
      %p179 = scmp.eq.s32.totalorder %s28, 0
      %p180 = por %p178, %p179
      %p181 = scmp.ne.s32.totalorder %s169, %s170
      %p182 = scmp.eq.s32.totalorder %s29, 1
      %p183 = por %p181, %p182
      %p185 = scmp.ne.s32.totalorder %s170, %s184
      %p186 = scmp.eq.s32.totalorder %s29, 0
      %p187 = por %p185, %p186
      %s188 = ssub.s32 %s23, %s30
      %p189 = scmp.eq.s32.totalorder %s188, 0
      %s191 = sadd.s32 %s190, 1
      %s192 = scalar_select %p189, %s190, %s191
      %p195 = pneg %p189
      %p196 = scmp.eq.s32.totalorder %s23, 1
      %p197 = por %p195, %p196
      %p198 = scmp.ne.s32.totalorder %s190, %s193
      %p199 = scmp.eq.s32.totalorder %s23, 0
      %p200 = por %p198, %p199
      %p201 = scmp.ne.s32.totalorder %s190, %s193
      %p202 = scmp.eq.s32.totalorder %s28, 1
      %p203 = por %p201, %p202
      %p204 = scmp.ne.s32.totalorder %s193, %s194
      %p205 = scmp.eq.s32.totalorder %s28, 0
      %p206 = por %p204, %p205
      %p207 = scmp.ne.s32.totalorder %s193, %s194
      %p208 = scmp.eq.s32.totalorder %s29, 1
      %p209 = por %p207, %p208
      %p211 = scmp.ne.s32.totalorder %s194, %s210
      %p212 = scmp.eq.s32.totalorder %s29, 0
      %p213 = por %p211, %p212
      %p214 = scmp.le.s32.totalorder 1, %s23
      %p215 = scmp.lt.s32.totalorder %s23, 3
      %p216 = pnand %p214, %p215
      %p217 = pneg %p216
      // Predicated region
      $region9: #{tpu_custom_call.1} parent=5 // pred_check
        _
      $region10: #{tpu_custom_call.1} parent=5 // pred_check_branch
        %219 = sbr.rel (%p216) target = $region12
      $region11: #{tpu_custom_call.1} parent=5 // pred_region
        %s220 = ssub.s32 %s23, 1
        // Predicated region
        $region13: #{tpu_custom_call.1} parent=11 // pred_check
          %p221 = pneg %p96
        $region14: #{tpu_custom_call.1} parent=11 // pred_check_branch
          %223 = sbr.rel (%p221) target = $region16
        $region15: #{tpu_custom_call.1} parent=11 // pred_region
          %s225 = ssub.s32 2048, 2048
          %226 = vsyncadd [#allocation6], %s225
          %s227 = sshll.u32 [#allocation7], 4
          %s228 = int_to_ptr.vmem [resolvable:$true] %s227
          %233 = dma.hbm_to_vmem [thread:$0]  %s2, 2048, %s228, [#allocation6], 128, 128, 8
        $region16: #{tpu_custom_call.1} parent=11 // pred_fallthru
          _
        // Predicated region
        $region17: #{tpu_custom_call.1} parent=11 // pred_check
          %p234 = pneg %p117
        $region18: #{tpu_custom_call.1} parent=11 // pred_check_branch
          %236 = sbr.rel (%p234) target = $region20
        $region19: #{tpu_custom_call.1} parent=11 // pred_region
          _
        $region20: #{tpu_custom_call.1} parent=11 // pred_fallthru
          _
        // Predicated region
        $region21: #{tpu_custom_call.1} parent=11 // pred_check
          %p237 = pneg %p138
        $region22: #{tpu_custom_call.1} parent=11 // pred_check_branch
          %239 = sbr.rel (%p237) target = $region24
        $region23: #{tpu_custom_call.1} parent=11 // pred_region
          %s241 = ssub.s32 1024, 1024
          %242 = vsyncadd [#allocation9], %s241
          %s243 = sshll.u32 [#allocation8], 4
          %s244 = int_to_ptr.vmem [resolvable:$true] %s243
          %249 = dma.hbm_to_vmem [thread:$0]  %s4, 1024, %s244, [#allocation9], 64, 64, 4
        $region24: #{tpu_custom_call.1} parent=11 // pred_fallthru
          _
        // Predicated region
        $region25: #{tpu_custom_call.1} parent=11 // pred_check
          %p250 = pneg %p159
        $region26: #{tpu_custom_call.1} parent=11 // pred_check_branch
          %252 = sbr.rel (%p250) target = $region28
        $region27: #{tpu_custom_call.1} parent=11 // pred_region
          %s254 = ssub.s32 16, 16
          %255 = vsyncadd [#allocation9], %s254
          %s257 = sshll.u32 [#allocation10], 4
          %s258 = int_to_ptr.vmem [resolvable:$true] %s257
          %260 = dma.hbm_to_vmem [thread:$0]  %s5, 16, %s258, [#allocation9]
        $region28: #{tpu_custom_call.1} parent=11 // pred_fallthru
          _
        // Predicated region
        $region29: #{tpu_custom_call.1} parent=11 // pred_check
          %p261 = pneg %p180
        $region30: #{tpu_custom_call.1} parent=11 // pred_check_branch
          %263 = sbr.rel (%p261) target = $region32
        $region31: #{tpu_custom_call.1} parent=11 // pred_region
          _
        $region32: #{tpu_custom_call.1} parent=11 // pred_fallthru
          _
      $region12: #{tpu_custom_call.1} parent=5 // pred_fallthru
        _
      %p264 = scmp.lt.s32.totalorder %s23, 2
      // Predicated region
      $region33: #{tpu_custom_call.1} parent=5 // pred_check
        %p265 = pneg %p264
      $region34: #{tpu_custom_call.1} parent=5 // pred_check_branch
        %267 = sbr.rel (%p265) target = $region36
      $region35: #{tpu_custom_call.1} parent=5 // pred_region
        // Predicated region
        $region37: #{tpu_custom_call.1} parent=35 // pred_check
          %p268 = pneg %p43
        $region38: #{tpu_custom_call.1} parent=35 // pred_check_branch
          %270 = sbr.rel (%p268) target = $region40
        $region39: #{tpu_custom_call.1} parent=35 // pred_region
          %s271 = sand.u32 %s33, 1
          %s272 = scalar_lea.sflag [#allocation3], %s271
          %s273 = sand.u32 %s33, 1
          %s274 = smul.addr %s273, 8
          %s275 = scalar_lea.vmem [#allocation2], %s274
          %s277 = ssub.s32 128, 128
          %278 = vsyncadd %s272, %s277
          %s279 = smul.addr %s23, 128
          %s280 = scalar_lea.hbm %s0, %s279
          %s282 = sshll.u32 %s275, 4
          %s283 = int_to_ptr.vmem [resolvable:$true] %s282
          %285 = dma.hbm_to_vmem [thread:$0]  %s280, 128, %s283, %s272
        $region40: #{tpu_custom_call.1} parent=35 // pred_fallthru
          _
        // Predicated region
        $region41: #{tpu_custom_call.1} parent=35 // pred_check
          %p286 = pneg %p69
        $region42: #{tpu_custom_call.1} parent=35 // pred_check_branch
          %288 = sbr.rel (%p286) target = $region44
        $region43: #{tpu_custom_call.1} parent=35 // pred_region
          %s289 = sand.u32 %s23, 1
          %s290 = scalar_lea.sflag [#allocation6], %s289
          %s291 = sand.u32 %s59, 1
          %s292 = smul.addr %s291, 8
          %s293 = scalar_lea.vmem [#allocation5], %s292
          %s295 = ssub.s32 128, 128
          %296 = vsyncadd %s290, %s295
          %s297 = smul.addr %s23, 128
          %s298 = scalar_lea.hbm %s1, %s297
          %s300 = sshll.u32 %s293, 4
          %s301 = int_to_ptr.vmem [resolvable:$true] %s300
          %303 = dma.hbm_to_vmem [thread:$0]  %s298, 128, %s301, %s290
        $region44: #{tpu_custom_call.1} parent=35 // pred_fallthru
          _
      $region36: #{tpu_custom_call.1} parent=5 // pred_fallthru
        _
      %p304 = scmp.le.s32.totalorder 1, %s23
      %p305 = scmp.lt.s32.totalorder %s23, 3
      %p306 = pnand %p304, %p305
      %p307 = pneg %p306
      // Predicated region
      $region45: #{tpu_custom_call.1} parent=5 // pred_check
        _
      $region46: #{tpu_custom_call.1} parent=5 // pred_check_branch
        %309 = sbr.rel (%p306) target = $region48
      $region47: #{tpu_custom_call.1} parent=5 // pred_region
        %s310 = ssub.s32 %s23, 1
        %s311 = sand.u32 %s36, 1
        %s312 = scalar_lea.sflag [#allocation3], %s311
        %s313 = sand.u32 %s36, 1
        %s314 = smul.addr %s313, 8
        %s315 = scalar_lea.vmem [#allocation2], %s314
        // Predicated region
        $region49: #{tpu_custom_call.1} parent=47 // pred_check
          %p316 = pneg %p49
        $region50: #{tpu_custom_call.1} parent=47 // pred_check_branch
          %318 = sbr.rel (%p316) target = $region52
        $region51: #{tpu_custom_call.1} parent=47 // pred_region
          %319 = dma.done %s312, 128
        $region52: #{tpu_custom_call.1} parent=47 // pred_fallthru
          _
        %s320 = sand.u32 %s28, 1
        %s321 = scalar_lea.sflag [#allocation6], %s320
        %s322 = sand.u32 %s62, 1
        %s323 = smul.addr %s322, 8
        %s324 = scalar_lea.vmem [#allocation5], %s323
        // Predicated region
        $region53: #{tpu_custom_call.1} parent=47 // pred_check
          %p325 = pneg %p75
        $region54: #{tpu_custom_call.1} parent=47 // pred_check_branch
          %327 = sbr.rel (%p325) target = $region56
        $region55: #{tpu_custom_call.1} parent=47 // pred_region
          %328 = dma.done %s321, 128
        $region56: #{tpu_custom_call.1} parent=47 // pred_fallthru
          _
        // Predicated region
        $region57: #{tpu_custom_call.1} parent=47 // pred_check
          %p329 = pneg %p96
        $region58: #{tpu_custom_call.1} parent=47 // pred_check_branch
          %331 = sbr.rel (%p329) target = $region60
        $region59: #{tpu_custom_call.1} parent=47 // pred_region
          %332 = dma.done [#allocation6], 2048
        $region60: #{tpu_custom_call.1} parent=47 // pred_fallthru
          _
        // Predicated region
        $region61: #{tpu_custom_call.1} parent=47 // pred_check
          %p333 = pneg %p138
        $region62: #{tpu_custom_call.1} parent=47 // pred_check_branch
          %335 = sbr.rel (%p333) target = $region64
        $region63: #{tpu_custom_call.1} parent=47 // pred_region
          %336 = dma.done [#allocation9], 1024
        $region64: #{tpu_custom_call.1} parent=47 // pred_fallthru
          _
        // Predicated region
        $region65: #{tpu_custom_call.1} parent=47 // pred_check
          %p337 = pneg %p159
        $region66: #{tpu_custom_call.1} parent=47 // pred_check_branch
          %339 = sbr.rel (%p337) target = $region68
        $region67: #{tpu_custom_call.1} parent=47 // pred_region
          %340 = dma.done [#allocation9], 16
        $region68: #{tpu_custom_call.1} parent=47 // pred_fallthru
          _
        %s341 = sand.u32 %s36, 1
        %s342 = scalar_lea.sflag [#allocation3], %s341
        %s343 = sand.u32 %s36, 1
        %s344 = smul.addr %s343, 8
        %s345 = scalar_lea.vmem [#allocation2], %s344
        %p346 = pneg %p49
        %p347 = pneg %p46
        %s348 = sand.u32 %s28, 1
        %s349 = scalar_lea.sflag [#allocation6], %s348
        %s350 = sand.u32 %s62, 1
        %s351 = smul.addr %s350, 8
        %s352 = scalar_lea.vmem [#allocation5], %s351
        %p353 = pneg %p75
        %p354 = pneg %p72
        %p355 = pneg %p96
        %p356 = pneg %p93
        %p357 = pneg %p117
        %p358 = pneg %p114
        %p359 = pneg %p138
        %p360 = pneg %p135
        %p361 = pneg %p159
        %p362 = pneg %p156
        %p363 = pneg %p180
        %p364 = pneg %p177
        %p365 = pneg %p206
        %p366 = pneg %p203
        %s367 = sand.u32 %s193, 1
        %s368 = scalar_lea.sflag [#allocation4], %s367
        %s369 = sand.u32 %s193, 1
        %s370 = smul.addr %s369, 4
        %s371 = scalar_lea.vmem [#allocation11], %s370
        %v373 = vld [vmem:[%s315] sm:$0xff]
        %v374 = vpack.c.bf16 %v373, %v373
        %v375 = vld [vmem:[%s324] sm:$0xff]
        %v376 = vpack.c.bf16 %v375, %v375
        %v377 = vld [vmem:[#allocation7] sm:$0xff]
        %v378 = vld [vmem:[#allocation7 + $0x8] sm:$0xff]
        %v379 = vld [vmem:[#allocation7 + $0x10] sm:$0xff]
        %v380 = vld [vmem:[#allocation7 + $0x18] sm:$0xff]
        %v381 = vld [vmem:[#allocation7 + $0x20] sm:$0xff]
        %v382 = vld [vmem:[#allocation7 + $0x28] sm:$0xff]
        %v383 = vld [vmem:[#allocation7 + $0x30] sm:$0xff]
        %v384 = vld [vmem:[#allocation7 + $0x38] sm:$0xff]
        %v385 = vld [vmem:[#allocation7 + $0x40] sm:$0xff]
        %v386 = vld [vmem:[#allocation7 + $0x48] sm:$0xff]
        %v387 = vld [vmem:[#allocation7 + $0x50] sm:$0xff]
        %v388 = vld [vmem:[#allocation7 + $0x58] sm:$0xff]
        %v389 = vld [vmem:[#allocation7 + $0x60] sm:$0xff]
        %v390 = vld [vmem:[#allocation7 + $0x68] sm:$0xff]
        %v391 = vld [vmem:[#allocation7 + $0x70] sm:$0xff]
        %v392 = vld [vmem:[#allocation7 + $0x78] sm:$0xff]
        %v393 = vld [vmem:[%s3] sm:$0x3]
        %v395 = vlaneseq
        %v396 = vshrl.u32 %v395, 7
        %v397 = vsub.s32 0, %v396
        %v398 = vrot.slane %v393, %v397
        %v399 = vlaneseq
        %v400 = vshrl.u32 %v399, 7
        %v401 = vsub.s32 1, %v400
        %v402 = vrot.slane %v393, %v401
        %v421 = vunpack.c.l.b16 %v377
        %v422 = vunpack.c.h.b16 %v377
        %v423 = vunpack.c.l.b16 %v378
        %v424 = vunpack.c.h.b16 %v378
        %v425 = vunpack.c.l.b16 %v379
        %v426 = vunpack.c.h.b16 %v379
        %v427 = vunpack.c.l.b16 %v380
        %v428 = vunpack.c.h.b16 %v380
        %v429 = vunpack.c.l.b16 %v381
        %v430 = vunpack.c.h.b16 %v381
        %v431 = vunpack.c.l.b16 %v382
        %v432 = vunpack.c.h.b16 %v382
        %v433 = vunpack.c.l.b16 %v383
        %v434 = vunpack.c.h.b16 %v383
        %v435 = vunpack.c.l.b16 %v384
        %v436 = vunpack.c.h.b16 %v384
        %v437 = vunpack.c.l.b16 %v385
        %v438 = vunpack.c.h.b16 %v385
        %v439 = vunpack.c.l.b16 %v386
        %v440 = vunpack.c.h.b16 %v386
        %v441 = vunpack.c.l.b16 %v387
        %v442 = vunpack.c.h.b16 %v387
        %v443 = vunpack.c.l.b16 %v388
        %v444 = vunpack.c.h.b16 %v388
        %v445 = vunpack.c.l.b16 %v389
        %v446 = vunpack.c.h.b16 %v389
        %v447 = vunpack.c.l.b16 %v390
        %v448 = vunpack.c.h.b16 %v390
        %v449 = vunpack.c.l.b16 %v391
        %v450 = vunpack.c.h.b16 %v391
        %v451 = vunpack.c.l.b16 %v392
        %v452 = vunpack.c.h.b16 %v392
        %v453 = vpack.c.b16 %v423, %v421
        %v454 = vpack.c.b16 %v424, %v422
        %v455 = vpack.c.b16 %v427, %v425
        %v456 = vpack.c.b16 %v428, %v426
        %v457 = vpack.c.b16 %v431, %v429
        %v458 = vpack.c.b16 %v432, %v430
        %v459 = vpack.c.b16 %v435, %v433
        %v460 = vpack.c.b16 %v436, %v434
        %v461 = vpack.c.b16 %v439, %v437
        %v462 = vpack.c.b16 %v440, %v438
        %v463 = vpack.c.b16 %v443, %v441
        %v464 = vpack.c.b16 %v444, %v442
        %v465 = vpack.c.b16 %v447, %v445
        %v466 = vpack.c.b16 %v448, %v446
        %v467 = vpack.c.b16 %v451, %v449
        %v468 = vpack.c.b16 %v452, %v450
        %485 = vmatprep.subr.bf16.mxu0 %v468
        %486 = vmatpush1.bf16.msra.mxu0 %v467
        %487 = vmatprep.subr.bf16.mxu0 %v466
        %488 = vmatpush1.bf16.msra.mxu0 %v465
        %489 = vmatprep.subr.bf16.mxu0 %v464
        %490 = vmatpush1.bf16.msra.mxu0 %v463
        %491 = vmatprep.subr.bf16.mxu0 %v462
        %492 = vmatpush1.bf16.msra.mxu0 %v461
        %493 = vmatprep.subr.bf16.mxu0 %v460
        %494 = vmatpush1.bf16.msra.mxu0 %v459
        %495 = vmatprep.subr.bf16.mxu0 %v458
        %496 = vmatpush1.bf16.msra.mxu0 %v457
        %497 = vmatprep.subr.bf16.mxu0 %v456
        %498 = vmatpush1.bf16.msra.mxu0 %v455
        %499 = vmatprep.subr.bf16.mxu0 %v454
        %500 = vmatpush1.bf16.msra.mxu0 %v453
        %501 = vmatprep.subr.bf16.mxu0 0
        %502 = vmatpush2.bf16.msra.mxu0 0
        %503 = vmatprep.subr.bf16.mxu0 0
        %504 = vmatpush2.bf16.msra.mxu0 0
        %505 = vmatprep.subr.bf16.mxu0 0
        %506 = vmatpush2.bf16.msra.mxu0 0
        %507 = vmatprep.subr.bf16.mxu0 0
        %508 = vmatpush2.bf16.msra.mxu0 0
        %509 = vmatprep.subr.bf16.mxu0 0
        %510 = vmatpush2.bf16.msra.mxu0 0
        %511 = vmatprep.subr.bf16.mxu0 0
        %512 = vmatpush2.bf16.msra.mxu0 0
        %513 = vmatprep.subr.bf16.mxu0 0
        %514 = vmatpush2.bf16.msra.mxu0 0
        %515 = vmatprep.subr.bf16.mxu0 0
        %516 = vmatpush2.bf16.msra.mxu0 0
        %517 = vmatprep.mubr.bf16.mxu0 0
        %518 = vmatmul.mubr.bf16.gmra.mxu0 %v374
        %v519 = vpop.f32.mrf.mxu0
        %v520 = vadd.f32 %v398, %v519
        %v521 = vpop.f32.mrf.mxu0
        %v522 = vadd.f32 %v402, %v521
        %v523 = vpop.f32.mrf.mxu0
        %v524 = vpop.f32.mrf.mxu0
        %525 = vdwg.mxu0
        %v526 = vpack.c.bf16 %v520, %v520
        %v527 = vpack.c.bf16 %v522, %v522
        %v528 = vld [vmem:[#allocation8] sm:$0xf]
        %v529 = vld [vmem:[#allocation8 + $0x4] sm:$0xf]
        %v530 = vld [vmem:[#allocation8 + $0x8] sm:$0xf]
        %v531 = vld [vmem:[#allocation8 + $0xc] sm:$0xf]
        %v532 = vld [vmem:[#allocation8 + $0x10] sm:$0xf]
        %v533 = vld [vmem:[#allocation8 + $0x14] sm:$0xf]
        %v534 = vld [vmem:[#allocation8 + $0x18] sm:$0xf]
        %v535 = vld [vmem:[#allocation8 + $0x1c] sm:$0xf]
        %v536 = vld [vmem:[#allocation8 + $0x20] sm:$0xf]
        %v537 = vld [vmem:[#allocation8 + $0x24] sm:$0xf]
        %v538 = vld [vmem:[#allocation8 + $0x28] sm:$0xf]
        %v539 = vld [vmem:[#allocation8 + $0x2c] sm:$0xf]
        %v540 = vld [vmem:[#allocation8 + $0x30] sm:$0xf]
        %v541 = vld [vmem:[#allocation8 + $0x34] sm:$0xf]
        %v542 = vld [vmem:[#allocation8 + $0x38] sm:$0xf]
        %v543 = vld [vmem:[#allocation8 + $0x3c] sm:$0xf]
        %v544 = vld [vmem:[#allocation10] sm:$0x1]
        %v546 = vlaneseq
        %v547 = vshrl.u32 %v546, 7
        %v548 = vsub.s32 0, %v547
        %v549 = vrot.slane %v544, %v548
        %v567 = vunpack.c.l.b16 %v528
        %v568 = vunpack.c.l.b16 %v529
        %v569 = vunpack.c.l.b16 %v530
        %v570 = vunpack.c.l.b16 %v531
        %v571 = vunpack.c.l.b16 %v532
        %v572 = vunpack.c.l.b16 %v533
        %v573 = vunpack.c.l.b16 %v534
        %v574 = vunpack.c.l.b16 %v535
        %v575 = vunpack.c.l.b16 %v536
        %v576 = vunpack.c.l.b16 %v537
        %v577 = vunpack.c.l.b16 %v538
        %v578 = vunpack.c.l.b16 %v539
        %v579 = vunpack.c.l.b16 %v540
        %v580 = vunpack.c.l.b16 %v541
        %v581 = vunpack.c.l.b16 %v542
        %v582 = vunpack.c.l.b16 %v543
        %v583 = vpack.c.b16 %v568, %v567
        %v584 = vpack.c.b16 %v570, %v569
        %v585 = vpack.c.b16 %v572, %v571
        %v586 = vpack.c.b16 %v574, %v573
        %v587 = vpack.c.b16 %v576, %v575
        %v588 = vpack.c.b16 %v578, %v577
        %v589 = vpack.c.b16 %v580, %v579
        %v590 = vpack.c.b16 %v582, %v581
        %599 = vmatprep.subr.bf16.mxu0 0
        %600 = vmatpush1.bf16.msra.mxu0 %v590
        %601 = vmatprep.subr.bf16.mxu0 0
        %602 = vmatpush1.bf16.msra.mxu0 %v589
        %603 = vmatprep.subr.bf16.mxu0 0
        %604 = vmatpush1.bf16.msra.mxu0 %v588
        %605 = vmatprep.subr.bf16.mxu0 0
        %606 = vmatpush1.bf16.msra.mxu0 %v587
        %607 = vmatprep.subr.bf16.mxu0 0
        %608 = vmatpush1.bf16.msra.mxu0 %v586
        %609 = vmatprep.subr.bf16.mxu0 0
        %610 = vmatpush1.bf16.msra.mxu0 %v585
        %611 = vmatprep.subr.bf16.mxu0 0
        %612 = vmatpush1.bf16.msra.mxu0 %v584
        %613 = vmatprep.subr.bf16.mxu0 0
        %614 = vmatpush1.bf16.msra.mxu0 %v583
        %615 = vmatprep.subr.bf16.mxu0 0
        %616 = vmatpush2.bf16.msra.mxu0 0
        %617 = vmatprep.subr.bf16.mxu0 0
        %618 = vmatpush2.bf16.msra.mxu0 0
        %619 = vmatprep.subr.bf16.mxu0 0
        %620 = vmatpush2.bf16.msra.mxu0 0
        %621 = vmatprep.subr.bf16.mxu0 0
        %622 = vmatpush2.bf16.msra.mxu0 0
        %623 = vmatprep.subr.bf16.mxu0 0
        %624 = vmatpush2.bf16.msra.mxu0 0
        %625 = vmatprep.subr.bf16.mxu0 0
        %626 = vmatpush2.bf16.msra.mxu0 0
        %627 = vmatprep.subr.bf16.mxu0 0
        %628 = vmatpush2.bf16.msra.mxu0 0
        %629 = vmatprep.subr.bf16.mxu0 0
        %630 = vmatpush2.bf16.msra.mxu0 0
        %631 = vmatprep.mubr.bf16.mxu0 0
        %632 = vmatmul.mubr.bf16.gmra.mxu0 %v376
        %v633 = vpop.f32.mrf.mxu0
        %v634 = vadd.f32 %v549, %v633
        %v635 = vpop.f32.mrf.mxu0
        %v636 = vpop.f32.mrf.mxu0
        %v637 = vpop.f32.mrf.mxu0
        %638 = vdwg.mxu0
        %v639 = vpack.c.bf16 %v634, %v634
        %v640 = vld [vmem:[%s6] sm:$0xff]
        %vm641 = vcmask 130048
        %v643 = vsel %vm641, %v639, 0
        %v646 = vsel %vm641, %v526, 0
        %648 = vmatprep.subr.bf16.mxu0 0
        %649 = vmatpush1.bf16.xpose.msra.mxu0 0
        %650 = vmatprep.subr.bf16.mxu0 0
        %651 = vmatpush1.bf16.xpose.msra.mxu0 0
        %652 = vmatprep.subr.bf16.mxu0 0
        %653 = vmatpush1.bf16.xpose.msra.mxu0 0
        %654 = vmatprep.subr.bf16.mxu0 0
        %655 = vmatpush1.bf16.xpose.msra.mxu0 0
        %656 = vmatprep.subr.bf16.mxu0 0
        %657 = vmatpush1.bf16.xpose.msra.mxu0 0
        %658 = vmatprep.subr.bf16.mxu0 0
        %659 = vmatpush1.bf16.xpose.msra.mxu0 0
        %660 = vmatprep.subr.bf16.mxu0 0
        %661 = vmatpush1.bf16.xpose.msra.mxu0 0
        %662 = vmatprep.subr.bf16.mxu0 0
        %663 = vmatpush1.bf16.xpose.msra.mxu0 %v646
        %664 = vmatprep.subr.bf16.mxu0 0
        %665 = vmatpush2.bf16.xpose.msra.mxu0 0
        %666 = vmatprep.subr.bf16.mxu0 0
        %667 = vmatpush2.bf16.xpose.msra.mxu0 0
        %668 = vmatprep.subr.bf16.mxu0 0
        %669 = vmatpush2.bf16.xpose.msra.mxu0 0
        %670 = vmatprep.subr.bf16.mxu0 0
        %671 = vmatpush2.bf16.xpose.msra.mxu0 0
        %672 = vmatprep.subr.bf16.mxu0 0
        %673 = vmatpush2.bf16.xpose.msra.mxu0 0
        %674 = vmatprep.subr.bf16.mxu0 0
        %675 = vmatpush2.bf16.xpose.msra.mxu0 0
        %676 = vmatprep.subr.bf16.mxu0 0
        %677 = vmatpush2.bf16.xpose.msra.mxu0 0
        %678 = vmatprep.subr.bf16.mxu0 0
        %679 = vmatpush2.bf16.xpose.msra.mxu0 0
        %680 = vmatprep.mubr.bf16.mxu0 0
        %681 = vmatmul.mubr.bf16.gmra.mxu0 %v643
        %v682 = vpop.f32.mrf.mxu0
        %v683 = vadd.f32 %v640, %v682
        %v684 = vpop.f32.mrf.mxu0
        %v685 = vpop.f32.mrf.mxu0
        %v686 = vpop.f32.mrf.mxu0
        %687 = vdwg.mxu0
        %vm688 = vcmask 64512
        %v689 = vsel %vm688, %v683, -inf
        %690 = vmax.xlane.f32.xlu0 %v689
        %v691 = vpop.xlane.xlu0 %690
        %v692 = vsub.f32 %v683, %v691
        %v693 = vmul.f32 %v692, 1.442695
        %v694 = vpow.pop %v693
        %v695 = vsel %vm688, %v694, 0.0
        %696 = vadd.xlane.f32.xlu0 %v695
        %v697 = vpop.xlane.xlu0 %696
        %v698 = vrcp.pop %v697
        %v699 = vmul.f32 %v694, %v698
        %v700 = vpack.c.bf16 %v699, %v699
        %702 = vrot.lane.b32.xlu0 %v526, 112
        %v703 = vpop.permute.xlu0 %702
        %v705 = vsel %vm688, %v700, 0
        %vm707 = vcmask 1043456
        %v709 = vsel %vm707, %v703, 0
        %711 = vmatprep.subr.bf16.mxu0 0
        %712 = vmatpush1.bf16.msra.mxu0 0
        %713 = vmatprep.subr.bf16.mxu0 0
        %714 = vmatpush1.bf16.msra.mxu0 0
        %715 = vmatprep.subr.bf16.mxu0 0
        %716 = vmatpush1.bf16.msra.mxu0 0
        %717 = vmatprep.subr.bf16.mxu0 0
        %718 = vmatpush1.bf16.msra.mxu0 0
        %719 = vmatprep.subr.bf16.mxu0 0
        %720 = vmatpush1.bf16.msra.mxu0 0
        %721 = vmatprep.subr.bf16.mxu0 0
        %722 = vmatpush1.bf16.msra.mxu0 0
        %723 = vmatprep.subr.bf16.mxu0 0
        %724 = vmatpush1.bf16.msra.mxu0 0
        %725 = vmatprep.subr.bf16.mxu0 0
        %726 = vmatpush1.bf16.msra.mxu0 %v709
        %727 = vmatprep.subr.bf16.mxu0 0
        %728 = vmatpush2.bf16.msra.mxu0 0
        %729 = vmatprep.subr.bf16.mxu0 0
        %730 = vmatpush2.bf16.msra.mxu0 0
        %731 = vmatprep.subr.bf16.mxu0 0
        %732 = vmatpush2.bf16.msra.mxu0 0
        %733 = vmatprep.subr.bf16.mxu0 0
        %734 = vmatpush2.bf16.msra.mxu0 0
        %735 = vmatprep.subr.bf16.mxu0 0
        %736 = vmatpush2.bf16.msra.mxu0 0
        %737 = vmatprep.subr.bf16.mxu0 0
        %738 = vmatpush2.bf16.msra.mxu0 0
        %739 = vmatprep.subr.bf16.mxu0 0
        %740 = vmatpush2.bf16.msra.mxu0 0
        %741 = vmatprep.subr.bf16.mxu0 0
        %742 = vmatpush2.bf16.msra.mxu0 0
        %743 = vmatprep.mubr.bf16.mxu0 0
        %744 = vmatmul.mubr.bf16.gmra.mxu0 %v705
        %v745 = vpop.f32.mrf.mxu0
        %v746 = vadd.f32 0.0, %v745
        %v747 = vpop.f32.mrf.mxu0
        %v748 = vpop.f32.mrf.mxu0
        %v749 = vpop.f32.mrf.mxu0
        %750 = vdwg.mxu0
        %v751 = vpack.c.bf16 %v746, %v746
        %vm752 = vcmask 125952
        %753 = vst.msk [vmem:[%s371] sm:$0xf] %vm752, %v751
        %755 = vrot.lane.b32.xlu0 %v639, 112
        %v756 = vpop.permute.xlu0 %755
        %757 = vrot.lane.b32.xlu0 %v526, 96
        %v758 = vpop.permute.xlu0 %757
        %v760 = vsel %vm641, %v756, 0
        %v763 = vsel %vm641, %v758, 0
        %765 = vmatprep.subr.bf16.mxu0 0
        %766 = vmatpush1.bf16.xpose.msra.mxu0 0
        %767 = vmatprep.subr.bf16.mxu0 0
        %768 = vmatpush1.bf16.xpose.msra.mxu0 0
        %769 = vmatprep.subr.bf16.mxu0 0
        %770 = vmatpush1.bf16.xpose.msra.mxu0 0
        %771 = vmatprep.subr.bf16.mxu0 0
        %772 = vmatpush1.bf16.xpose.msra.mxu0 0
        %773 = vmatprep.subr.bf16.mxu0 0
        %774 = vmatpush1.bf16.xpose.msra.mxu0 0
        %775 = vmatprep.subr.bf16.mxu0 0
        %776 = vmatpush1.bf16.xpose.msra.mxu0 0
        %777 = vmatprep.subr.bf16.mxu0 0
        %778 = vmatpush1.bf16.xpose.msra.mxu0 0
        %779 = vmatprep.subr.bf16.mxu0 0
        %780 = vmatpush1.bf16.xpose.msra.mxu0 %v763
        %781 = vmatprep.subr.bf16.mxu0 0
        %782 = vmatpush2.bf16.xpose.msra.mxu0 0
        %783 = vmatprep.subr.bf16.mxu0 0
        %784 = vmatpush2.bf16.xpose.msra.mxu0 0
        %785 = vmatprep.subr.bf16.mxu0 0
        %786 = vmatpush2.bf16.xpose.msra.mxu0 0
        %787 = vmatprep.subr.bf16.mxu0 0
        %788 = vmatpush2.bf16.xpose.msra.mxu0 0
        %789 = vmatprep.subr.bf16.mxu0 0
        %790 = vmatpush2.bf16.xpose.msra.mxu0 0
        %791 = vmatprep.subr.bf16.mxu0 0
        %792 = vmatpush2.bf16.xpose.msra.mxu0 0
        %793 = vmatprep.subr.bf16.mxu0 0
        %794 = vmatpush2.bf16.xpose.msra.mxu0 0
        %795 = vmatprep.subr.bf16.mxu0 0
        %796 = vmatpush2.bf16.xpose.msra.mxu0 0
        %797 = vmatprep.mubr.bf16.mxu0 0
        %798 = vmatmul.mubr.bf16.gmra.mxu0 %v760
        %v799 = vpop.f32.mrf.mxu0
        %v800 = vadd.f32 %v640, %v799
        %v801 = vpop.f32.mrf.mxu0
        %v802 = vpop.f32.mrf.mxu0
        %v803 = vpop.f32.mrf.mxu0
        %804 = vdwg.mxu0
        %v805 = vsel %vm688, %v800, -inf
        %806 = vmax.xlane.f32.xlu0 %v805
        %v807 = vpop.xlane.xlu0 %806
        %v808 = vsub.f32 %v800, %v807
        %v809 = vmul.f32 %v808, 1.442695
        %v810 = vpow.pop %v809
        %v811 = vsel %vm688, %v810, 0.0
        %812 = vadd.xlane.f32.xlu0 %v811
        %v813 = vpop.xlane.xlu0 %812
        %v814 = vrcp.pop %v813
        %v815 = vmul.f32 %v810, %v814
        %v816 = vpack.c.bf16 %v815, %v815
        %817 = vrot.lane.b32.xlu0 %v526, 80
        %v818 = vpop.permute.xlu0 %817
        %v820 = vsel %vm688, %v816, 0
        %v823 = vsel %vm707, %v818, 0
        %825 = vmatprep.subr.bf16.mxu0 0
        %826 = vmatpush1.bf16.msra.mxu0 0
        %827 = vmatprep.subr.bf16.mxu0 0
        %828 = vmatpush1.bf16.msra.mxu0 0
        %829 = vmatprep.subr.bf16.mxu0 0
        %830 = vmatpush1.bf16.msra.mxu0 0
        %831 = vmatprep.subr.bf16.mxu0 0
        %832 = vmatpush1.bf16.msra.mxu0 0
        %833 = vmatprep.subr.bf16.mxu0 0
        %834 = vmatpush1.bf16.msra.mxu0 0
        %835 = vmatprep.subr.bf16.mxu0 0
        %836 = vmatpush1.bf16.msra.mxu0 0
        %837 = vmatprep.subr.bf16.mxu0 0
        %838 = vmatpush1.bf16.msra.mxu0 0
        %839 = vmatprep.subr.bf16.mxu0 0
        %840 = vmatpush1.bf16.msra.mxu0 %v823
        %841 = vmatprep.subr.bf16.mxu0 0
        %842 = vmatpush2.bf16.msra.mxu0 0
        %843 = vmatprep.subr.bf16.mxu0 0
        %844 = vmatpush2.bf16.msra.mxu0 0
        %845 = vmatprep.subr.bf16.mxu0 0
        %846 = vmatpush2.bf16.msra.mxu0 0
        %847 = vmatprep.subr.bf16.mxu0 0
        %848 = vmatpush2.bf16.msra.mxu0 0
        %849 = vmatprep.subr.bf16.mxu0 0
        %850 = vmatpush2.bf16.msra.mxu0 0
        %851 = vmatprep.subr.bf16.mxu0 0
        %852 = vmatpush2.bf16.msra.mxu0 0
        %853 = vmatprep.subr.bf16.mxu0 0
        %854 = vmatpush2.bf16.msra.mxu0 0
        %855 = vmatprep.subr.bf16.mxu0 0
        %856 = vmatpush2.bf16.msra.mxu0 0
        %857 = vmatprep.mubr.bf16.mxu0 0
        %858 = vmatmul.mubr.bf16.gmra.mxu0 %v820
        %v859 = vpop.f32.mrf.mxu0
        %v860 = vadd.f32 0.0, %v859
        %v861 = vpop.f32.mrf.mxu0
        %v862 = vpop.f32.mrf.mxu0
        %v863 = vpop.f32.mrf.mxu0
        %864 = vdwg.mxu0
        %v865 = vpack.c.bf16 %v860, %v860
        %v867 = vunpack.c.l.b16 %v865
        %v868 = vpack.c.b16 %v867, %v867
        %869 = vrot.lane.b32.xlu0 %v868, 16
        %v870 = vpop.permute.xlu0 %869
        %vm872 = vcmask 257152
        %873 = vst.msk [vmem:[%s371] sm:$0xf] %vm872, %v870
        %874 = vrot.lane.b32.xlu0 %v639, 96
        %v875 = vpop.permute.xlu0 %874
        %876 = vrot.lane.b32.xlu0 %v526, 64
        %v877 = vpop.permute.xlu0 %876
        %v879 = vsel %vm641, %v875, 0
        %v882 = vsel %vm641, %v877, 0
        %884 = vmatprep.subr.bf16.mxu0 0
        %885 = vmatpush1.bf16.xpose.msra.mxu0 0
        %886 = vmatprep.subr.bf16.mxu0 0
        %887 = vmatpush1.bf16.xpose.msra.mxu0 0
        %888 = vmatprep.subr.bf16.mxu0 0
        %889 = vmatpush1.bf16.xpose.msra.mxu0 0
        %890 = vmatprep.subr.bf16.mxu0 0
        %891 = vmatpush1.bf16.xpose.msra.mxu0 0
        %892 = vmatprep.subr.bf16.mxu0 0
        %893 = vmatpush1.bf16.xpose.msra.mxu0 0
        %894 = vmatprep.subr.bf16.mxu0 0
        %895 = vmatpush1.bf16.xpose.msra.mxu0 0
        %896 = vmatprep.subr.bf16.mxu0 0
        %897 = vmatpush1.bf16.xpose.msra.mxu0 0
        %898 = vmatprep.subr.bf16.mxu0 0
        %899 = vmatpush1.bf16.xpose.msra.mxu0 %v882
        %900 = vmatprep.subr.bf16.mxu0 0
        %901 = vmatpush2.bf16.xpose.msra.mxu0 0
        %902 = vmatprep.subr.bf16.mxu0 0
        %903 = vmatpush2.bf16.xpose.msra.mxu0 0
        %904 = vmatprep.subr.bf16.mxu0 0
        %905 = vmatpush2.bf16.xpose.msra.mxu0 0
        %906 = vmatprep.subr.bf16.mxu0 0
        %907 = vmatpush2.bf16.xpose.msra.mxu0 0
        %908 = vmatprep.subr.bf16.mxu0 0
        %909 = vmatpush2.bf16.xpose.msra.mxu0 0
        %910 = vmatprep.subr.bf16.mxu0 0
        %911 = vmatpush2.bf16.xpose.msra.mxu0 0
        %912 = vmatprep.subr.bf16.mxu0 0
        %913 = vmatpush2.bf16.xpose.msra.mxu0 0
        %914 = vmatprep.subr.bf16.mxu0 0
        %915 = vmatpush2.bf16.xpose.msra.mxu0 0
        %916 = vmatprep.mubr.bf16.mxu0 0
        %917 = vmatmul.mubr.bf16.gmra.mxu0 %v879
        %v918 = vpop.f32.mrf.mxu0
        %v919 = vadd.f32 %v640, %v918
        %v920 = vpop.f32.mrf.mxu0
        %v921 = vpop.f32.mrf.mxu0
        %v922 = vpop.f32.mrf.mxu0
        %923 = vdwg.mxu0
        %v924 = vsel %vm688, %v919, -inf
        %925 = vmax.xlane.f32.xlu0 %v924
        %v926 = vpop.xlane.xlu0 %925
        %v927 = vsub.f32 %v919, %v926
        %v928 = vmul.f32 %v927, 1.442695
        %v929 = vpow.pop %v928
        %v930 = vsel %vm688, %v929, 0.0
        %931 = vadd.xlane.f32.xlu0 %v930
        %v932 = vpop.xlane.xlu0 %931
        %v933 = vrcp.pop %v932
        %v934 = vmul.f32 %v929, %v933
        %v935 = vpack.c.bf16 %v934, %v934
        %936 = vrot.lane.b32.xlu0 %v526, 48
        %v937 = vpop.permute.xlu0 %936
        %v939 = vsel %vm688, %v935, 0
        %v942 = vsel %vm707, %v937, 0
        %944 = vmatprep.subr.bf16.mxu0 0
        %945 = vmatpush1.bf16.msra.mxu0 0
        %946 = vmatprep.subr.bf16.mxu0 0
        %947 = vmatpush1.bf16.msra.mxu0 0
        %948 = vmatprep.subr.bf16.mxu0 0
        %949 = vmatpush1.bf16.msra.mxu0 0
        %950 = vmatprep.subr.bf16.mxu0 0
        %951 = vmatpush1.bf16.msra.mxu0 0
        %952 = vmatprep.subr.bf16.mxu0 0
        %953 = vmatpush1.bf16.msra.mxu0 0
        %954 = vmatprep.subr.bf16.mxu0 0
        %955 = vmatpush1.bf16.msra.mxu0 0
        %956 = vmatprep.subr.bf16.mxu0 0
        %957 = vmatpush1.bf16.msra.mxu0 0
        %958 = vmatprep.subr.bf16.mxu0 0
        %959 = vmatpush1.bf16.msra.mxu0 %v942
        %960 = vmatprep.subr.bf16.mxu0 0
        %961 = vmatpush2.bf16.msra.mxu0 0
        %962 = vmatprep.subr.bf16.mxu0 0
        %963 = vmatpush2.bf16.msra.mxu0 0
        %964 = vmatprep.subr.bf16.mxu0 0
        %965 = vmatpush2.bf16.msra.mxu0 0
        %966 = vmatprep.subr.bf16.mxu0 0
        %967 = vmatpush2.bf16.msra.mxu0 0
        %968 = vmatprep.subr.bf16.mxu0 0
        %969 = vmatpush2.bf16.msra.mxu0 0
        %970 = vmatprep.subr.bf16.mxu0 0
        %971 = vmatpush2.bf16.msra.mxu0 0
        %972 = vmatprep.subr.bf16.mxu0 0
        %973 = vmatpush2.bf16.msra.mxu0 0
        %974 = vmatprep.subr.bf16.mxu0 0
        %975 = vmatpush2.bf16.msra.mxu0 0
        %976 = vmatprep.mubr.bf16.mxu0 0
        %977 = vmatmul.mubr.bf16.gmra.mxu0 %v939
        %v978 = vpop.f32.mrf.mxu0
        %v979 = vadd.f32 0.0, %v978
        %v980 = vpop.f32.mrf.mxu0
        %v981 = vpop.f32.mrf.mxu0
        %v982 = vpop.f32.mrf.mxu0
        %983 = vdwg.mxu0
        %v984 = vpack.c.bf16 %v979, %v979
        %v986 = vunpack.c.l.b16 %v984
        %v987 = vpack.c.b16 %v986, %v986
        %988 = vrot.lane.b32.xlu0 %v987, 32
        %v989 = vpop.permute.xlu0 %988
        %vm991 = vcmask 388352
        %992 = vst.msk [vmem:[%s371] sm:$0xf] %vm991, %v989
        %993 = vrot.lane.b32.xlu0 %v639, 80
        %v994 = vpop.permute.xlu0 %993
        %995 = vrot.lane.b32.xlu0 %v526, 32
        %v996 = vpop.permute.xlu0 %995
        %v998 = vsel %vm641, %v994, 0
        %v1001 = vsel %vm641, %v996, 0
        %1003 = vmatprep.subr.bf16.mxu0 0
        %1004 = vmatpush1.bf16.xpose.msra.mxu0 0
        %1005 = vmatprep.subr.bf16.mxu0 0
        %1006 = vmatpush1.bf16.xpose.msra.mxu0 0
        %1007 = vmatprep.subr.bf16.mxu0 0
        %1008 = vmatpush1.bf16.xpose.msra.mxu0 0
        %1009 = vmatprep.subr.bf16.mxu0 0
        %1010 = vmatpush1.bf16.xpose.msra.mxu0 0
        %1011 = vmatprep.subr.bf16.mxu0 0
        %1012 = vmatpush1.bf16.xpose.msra.mxu0 0
        %1013 = vmatprep.subr.bf16.mxu0 0
        %1014 = vmatpush1.bf16.xpose.msra.mxu0 0
        %1015 = vmatprep.subr.bf16.mxu0 0
        %1016 = vmatpush1.bf16.xpose.msra.mxu0 0
        %1017 = vmatprep.subr.bf16.mxu0 0
        %1018 = vmatpush1.bf16.xpose.msra.mxu0 %v1001
        %1019 = vmatprep.subr.bf16.mxu0 0
        %1020 = vmatpush2.bf16.xpose.msra.mxu0 0
        %1021 = vmatprep.subr.bf16.mxu0 0
        %1022 = vmatpush2.bf16.xpose.msra.mxu0 0
        %1023 = vmatprep.subr.bf16.mxu0 0
        %1024 = vmatpush2.bf16.xpose.msra.mxu0 0
        %1025 = vmatprep.subr.bf16.mxu0 0
        %1026 = vmatpush2.bf16.xpose.msra.mxu0 0
        %1027 = vmatprep.subr.bf16.mxu0 0
        %1028 = vmatpush2.bf16.xpose.msra.mxu0 0
        %1029 = vmatprep.subr.bf16.mxu0 0
        %1030 = vmatpush2.bf16.xpose.msra.mxu0 0
        %1031 = vmatprep.subr.bf16.mxu0 0
        %1032 = vmatpush2.bf16.xpose.msra.mxu0 0
        %1033 = vmatprep.subr.bf16.mxu0 0
        %1034 = vmatpush2.bf16.xpose.msra.mxu0 0
        %1035 = vmatprep.mubr.bf16.mxu0 0
        %1036 = vmatmul.mubr.bf16.gmra.mxu0 %v998
        %v1037 = vpop.f32.mrf.mxu0
        %v1038 = vadd.f32 %v640, %v1037
        %v1039 = vpop.f32.mrf.mxu0
        %v1040 = vpop.f32.mrf.mxu0
        %v1041 = vpop.f32.mrf.mxu0
        %1042 = vdwg.mxu0
        %v1043 = vsel %vm688, %v1038, -inf
        %1044 = vmax.xlane.f32.xlu0 %v1043
        %v1045 = vpop.xlane.xlu0 %1044
        %v1046 = vsub.f32 %v1038, %v1045
        %v1047 = vmul.f32 %v1046, 1.442695
        %v1048 = vpow.pop %v1047
        %v1049 = vsel %vm688, %v1048, 0.0
        %1050 = vadd.xlane.f32.xlu0 %v1049
        %v1051 = vpop.xlane.xlu0 %1050
        %v1052 = vrcp.pop %v1051
        %v1053 = vmul.f32 %v1048, %v1052
        %v1054 = vpack.c.bf16 %v1053, %v1053
        %1055 = vrot.lane.b32.xlu0 %v526, 16
        %v1056 = vpop.permute.xlu0 %1055
        %v1058 = vsel %vm688, %v1054, 0
        %v1061 = vsel %vm707, %v1056, 0
        %1063 = vmatprep.subr.bf16.mxu0 0
        %1064 = vmatpush1.bf16.msra.mxu0 0
        %1065 = vmatprep.subr.bf16.mxu0 0
        %1066 = vmatpush1.bf16.msra.mxu0 0
        %1067 = vmatprep.subr.bf16.mxu0 0
        %1068 = vmatpush1.bf16.msra.mxu0 0
        %1069 = vmatprep.subr.bf16.mxu0 0
        %1070 = vmatpush1.bf16.msra.mxu0 0
        %1071 = vmatprep.subr.bf16.mxu0 0
        %1072 = vmatpush1.bf16.msra.mxu0 0
        %1073 = vmatprep.subr.bf16.mxu0 0
        %1074 = vmatpush1.bf16.msra.mxu0 0
        %1075 = vmatprep.subr.bf16.mxu0 0
        %1076 = vmatpush1.bf16.msra.mxu0 0
        %1077 = vmatprep.subr.bf16.mxu0 0
        %1078 = vmatpush1.bf16.msra.mxu0 %v1061
        %1079 = vmatprep.subr.bf16.mxu0 0
        %1080 = vmatpush2.bf16.msra.mxu0 0
        %1081 = vmatprep.subr.bf16.mxu0 0
        %1082 = vmatpush2.bf16.msra.mxu0 0
        %1083 = vmatprep.subr.bf16.mxu0 0
        %1084 = vmatpush2.bf16.msra.mxu0 0
        %1085 = vmatprep.subr.bf16.mxu0 0
        %1086 = vmatpush2.bf16.msra.mxu0 0
        %1087 = vmatprep.subr.bf16.mxu0 0
        %1088 = vmatpush2.bf16.msra.mxu0 0
        %1089 = vmatprep.subr.bf16.mxu0 0
        %1090 = vmatpush2.bf16.msra.mxu0 0
        %1091 = vmatprep.subr.bf16.mxu0 0
        %1092 = vmatpush2.bf16.msra.mxu0 0
        %1093 = vmatprep.subr.bf16.mxu0 0
        %1094 = vmatpush2.bf16.msra.mxu0 0
        %1095 = vmatprep.mubr.bf16.mxu0 0
        %1096 = vmatmul.mubr.bf16.gmra.mxu0 %v1058
        %v1097 = vpop.f32.mrf.mxu0
        %v1098 = vadd.f32 0.0, %v1097
        %v1099 = vpop.f32.mrf.mxu0
        %v1100 = vpop.f32.mrf.mxu0
        %v1101 = vpop.f32.mrf.mxu0
        %1102 = vdwg.mxu0
        %v1103 = vpack.c.bf16 %v1098, %v1098
        %v1105 = vunpack.c.l.b16 %v1103
        %v1106 = vpack.c.b16 %v1105, %v1105
        %1107 = vrot.lane.b32.xlu0 %v1106, 48
        %v1108 = vpop.permute.xlu0 %1107
        %vm1110 = vcmask 519552
        %1111 = vst.msk [vmem:[%s371] sm:$0xf] %vm1110, %v1108
        %1112 = vrot.lane.b32.xlu0 %v639, 64
        %v1113 = vpop.permute.xlu0 %1112
        %v1115 = vsel %vm641, %v1113, 0
        %v1118 = vsel %vm641, %v527, 0
        %1120 = vmatprep.subr.bf16.mxu0 0
        %1121 = vmatpush1.bf16.xpose.msra.mxu0 0
        %1122 = vmatprep.subr.bf16.mxu0 0
        %1123 = vmatpush1.bf16.xpose.msra.mxu0 0
        %1124 = vmatprep.subr.bf16.mxu0 0
        %1125 = vmatpush1.bf16.xpose.msra.mxu0 0
        %1126 = vmatprep.subr.bf16.mxu0 0
        %1127 = vmatpush1.bf16.xpose.msra.mxu0 0
        %1128 = vmatprep.subr.bf16.mxu0 0
        %1129 = vmatpush1.bf16.xpose.msra.mxu0 0
        %1130 = vmatprep.subr.bf16.mxu0 0
        %1131 = vmatpush1.bf16.xpose.msra.mxu0 0
        %1132 = vmatprep.subr.bf16.mxu0 0
        %1133 = vmatpush1.bf16.xpose.msra.mxu0 0
        %1134 = vmatprep.subr.bf16.mxu0 0
        %1135 = vmatpush1.bf16.xpose.msra.mxu0 %v1118
        %1136 = vmatprep.subr.bf16.mxu0 0
        %1137 = vmatpush2.bf16.xpose.msra.mxu0 0
        %1138 = vmatprep.subr.bf16.mxu0 0
        %1139 = vmatpush2.bf16.xpose.msra.mxu0 0
        %1140 = vmatprep.subr.bf16.mxu0 0
        %1141 = vmatpush2.bf16.xpose.msra.mxu0 0
        %1142 = vmatprep.subr.bf16.mxu0 0
        %1143 = vmatpush2.bf16.xpose.msra.mxu0 0
        %1144 = vmatprep.subr.bf16.mxu0 0
        %1145 = vmatpush2.bf16.xpose.msra.mxu0 0
        %1146 = vmatprep.subr.bf16.mxu0 0
        %1147 = vmatpush2.bf16.xpose.msra.mxu0 0
        %1148 = vmatprep.subr.bf16.mxu0 0
        %1149 = vmatpush2.bf16.xpose.msra.mxu0 0
        %1150 = vmatprep.subr.bf16.mxu0 0
        %1151 = vmatpush2.bf16.xpose.msra.mxu0 0
        %1152 = vmatprep.mubr.bf16.mxu0 0
        %1153 = vmatmul.mubr.bf16.gmra.mxu0 %v1115
        %v1154 = vpop.f32.mrf.mxu0
        %v1155 = vadd.f32 %v640, %v1154
        %v1156 = vpop.f32.mrf.mxu0
        %v1157 = vpop.f32.mrf.mxu0
        %v1158 = vpop.f32.mrf.mxu0
        %1159 = vdwg.mxu0
        %v1160 = vsel %vm688, %v1155, -inf
        %1161 = vmax.xlane.f32.xlu0 %v1160
        %v1162 = vpop.xlane.xlu0 %1161
        %v1163 = vsub.f32 %v1155, %v1162
        %v1164 = vmul.f32 %v1163, 1.442695
        %v1165 = vpow.pop %v1164
        %v1166 = vsel %vm688, %v1165, 0.0
        %1167 = vadd.xlane.f32.xlu0 %v1166
        %v1168 = vpop.xlane.xlu0 %1167
        %v1169 = vrcp.pop %v1168
        %v1170 = vmul.f32 %v1165, %v1169
        %v1171 = vpack.c.bf16 %v1170, %v1170
        %1173 = vrot.lane.b32.xlu0 %v527, 112
        %v1174 = vpop.permute.xlu0 %1173
        %v1176 = vsel %vm688, %v1171, 0
        %v1179 = vsel %vm707, %v1174, 0
        %1181 = vmatprep.subr.bf16.mxu0 0
        %1182 = vmatpush1.bf16.msra.mxu0 0
        %1183 = vmatprep.subr.bf16.mxu0 0
        %1184 = vmatpush1.bf16.msra.mxu0 0
        %1185 = vmatprep.subr.bf16.mxu0 0
        %1186 = vmatpush1.bf16.msra.mxu0 0
        %1187 = vmatprep.subr.bf16.mxu0 0
        %1188 = vmatpush1.bf16.msra.mxu0 0
        %1189 = vmatprep.subr.bf16.mxu0 0
        %1190 = vmatpush1.bf16.msra.mxu0 0
        %1191 = vmatprep.subr.bf16.mxu0 0
        %1192 = vmatpush1.bf16.msra.mxu0 0
        %1193 = vmatprep.subr.bf16.mxu0 0
        %1194 = vmatpush1.bf16.msra.mxu0 0
        %1195 = vmatprep.subr.bf16.mxu0 0
        %1196 = vmatpush1.bf16.msra.mxu0 %v1179
        %1197 = vmatprep.subr.bf16.mxu0 0
        %1198 = vmatpush2.bf16.msra.mxu0 0
        %1199 = vmatprep.subr.bf16.mxu0 0
        %1200 = vmatpush2.bf16.msra.mxu0 0
        %1201 = vmatprep.subr.bf16.mxu0 0
        %1202 = vmatpush2.bf16.msra.mxu0 0
        %1203 = vmatprep.subr.bf16.mxu0 0
        %1204 = vmatpush2.bf16.msra.mxu0 0
        %1205 = vmatprep.subr.bf16.mxu0 0
        %1206 = vmatpush2.bf16.msra.mxu0 0
        %1207 = vmatprep.subr.bf16.mxu0 0
        %1208 = vmatpush2.bf16.msra.mxu0 0
        %1209 = vmatprep.subr.bf16.mxu0 0
        %1210 = vmatpush2.bf16.msra.mxu0 0
        %1211 = vmatprep.subr.bf16.mxu0 0
        %1212 = vmatpush2.bf16.msra.mxu0 0
        %1213 = vmatprep.mubr.bf16.mxu0 0
        %1214 = vmatmul.mubr.bf16.gmra.mxu0 %v1176
        %v1215 = vpop.f32.mrf.mxu0
        %v1216 = vadd.f32 0.0, %v1215
        %v1217 = vpop.f32.mrf.mxu0
        %v1218 = vpop.f32.mrf.mxu0
        %v1219 = vpop.f32.mrf.mxu0
        %1220 = vdwg.mxu0
        %v1221 = vpack.c.bf16 %v1216, %v1216
        %v1223 = vunpack.c.l.b16 %v1221
        %v1224 = vpack.c.b16 %v1223, %v1223
        %1225 = vrot.lane.b32.xlu0 %v1224, 64
        %v1226 = vpop.permute.xlu0 %1225
        %vm1228 = vcmask 650752
        %1229 = vst.msk [vmem:[%s371] sm:$0xf] %vm1228, %v1226
        %1230 = vrot.lane.b32.xlu0 %v639, 48
        %v1231 = vpop.permute.xlu0 %1230
        %1232 = vrot.lane.b32.xlu0 %v527, 96
        %v1233 = vpop.permute.xlu0 %1232
        %v1235 = vsel %vm641, %v1231, 0
        %v1238 = vsel %vm641, %v1233, 0
        %1240 = vmatprep.subr.bf16.mxu0 0
        %1241 = vmatpush1.bf16.xpose.msra.mxu0 0
        %1242 = vmatprep.subr.bf16.mxu0 0
        %1243 = vmatpush1.bf16.xpose.msra.mxu0 0
        %1244 = vmatprep.subr.bf16.mxu0 0
        %1245 = vmatpush1.bf16.xpose.msra.mxu0 0
        %1246 = vmatprep.subr.bf16.mxu0 0
        %1247 = vmatpush1.bf16.xpose.msra.mxu0 0
        %1248 = vmatprep.subr.bf16.mxu0 0
        %1249 = vmatpush1.bf16.xpose.msra.mxu0 0
        %1250 = vmatprep.subr.bf16.mxu0 0
        %1251 = vmatpush1.bf16.xpose.msra.mxu0 0
        %1252 = vmatprep.subr.bf16.mxu0 0
        %1253 = vmatpush1.bf16.xpose.msra.mxu0 0
        %1254 = vmatprep.subr.bf16.mxu0 0
        %1255 = vmatpush1.bf16.xpose.msra.mxu0 %v1238
        %1256 = vmatprep.subr.bf16.mxu0 0
        %1257 = vmatpush2.bf16.xpose.msra.mxu0 0
        %1258 = vmatprep.subr.bf16.mxu0 0
        %1259 = vmatpush2.bf16.xpose.msra.mxu0 0
        %1260 = vmatprep.subr.bf16.mxu0 0
        %1261 = vmatpush2.bf16.xpose.msra.mxu0 0
        %1262 = vmatprep.subr.bf16.mxu0 0
        %1263 = vmatpush2.bf16.xpose.msra.mxu0 0
        %1264 = vmatprep.subr.bf16.mxu0 0
        %1265 = vmatpush2.bf16.xpose.msra.mxu0 0
        %1266 = vmatprep.subr.bf16.mxu0 0
        %1267 = vmatpush2.bf16.xpose.msra.mxu0 0
        %1268 = vmatprep.subr.bf16.mxu0 0
        %1269 = vmatpush2.bf16.xpose.msra.mxu0 0
        %1270 = vmatprep.subr.bf16.mxu0 0
        %1271 = vmatpush2.bf16.xpose.msra.mxu0 0
        %1272 = vmatprep.mubr.bf16.mxu0 0
        %1273 = vmatmul.mubr.bf16.gmra.mxu0 %v1235
        %v1274 = vpop.f32.mrf.mxu0
        %v1275 = vadd.f32 %v640, %v1274
        %v1276 = vpop.f32.mrf.mxu0
        %v1277 = vpop.f32.mrf.mxu0
        %v1278 = vpop.f32.mrf.mxu0
        %1279 = vdwg.mxu0
        %v1280 = vsel %vm688, %v1275, -inf
        %1281 = vmax.xlane.f32.xlu0 %v1280
        %v1282 = vpop.xlane.xlu0 %1281
        %v1283 = vsub.f32 %v1275, %v1282
        %v1284 = vmul.f32 %v1283, 1.442695
        %v1285 = vpow.pop %v1284
        %v1286 = vsel %vm688, %v1285, 0.0
        %1287 = vadd.xlane.f32.xlu0 %v1286
        %v1288 = vpop.xlane.xlu0 %1287
        %v1289 = vrcp.pop %v1288
        %v1290 = vmul.f32 %v1285, %v1289
        %v1291 = vpack.c.bf16 %v1290, %v1290
        %1292 = vrot.lane.b32.xlu0 %v527, 80
        %v1293 = vpop.permute.xlu0 %1292
        %v1295 = vsel %vm688, %v1291, 0
        %v1298 = vsel %vm707, %v1293, 0
        %1300 = vmatprep.subr.bf16.mxu0 0
        %1301 = vmatpush1.bf16.msra.mxu0 0
        %1302 = vmatprep.subr.bf16.mxu0 0
        %1303 = vmatpush1.bf16.msra.mxu0 0
        %1304 = vmatprep.subr.bf16.mxu0 0
        %1305 = vmatpush1.bf16.msra.mxu0 0
        %1306 = vmatprep.subr.bf16.mxu0 0
        %1307 = vmatpush1.bf16.msra.mxu0 0
        %1308 = vmatprep.subr.bf16.mxu0 0
        %1309 = vmatpush1.bf16.msra.mxu0 0
        %1310 = vmatprep.subr.bf16.mxu0 0
        %1311 = vmatpush1.bf16.msra.mxu0 0
        %1312 = vmatprep.subr.bf16.mxu0 0
        %1313 = vmatpush1.bf16.msra.mxu0 0
        %1314 = vmatprep.subr.bf16.mxu0 0
        %1315 = vmatpush1.bf16.msra.mxu0 %v1298
        %1316 = vmatprep.subr.bf16.mxu0 0
        %1317 = vmatpush2.bf16.msra.mxu0 0
        %1318 = vmatprep.subr.bf16.mxu0 0
        %1319 = vmatpush2.bf16.msra.mxu0 0
        %1320 = vmatprep.subr.bf16.mxu0 0
        %1321 = vmatpush2.bf16.msra.mxu0 0
        %1322 = vmatprep.subr.bf16.mxu0 0
        %1323 = vmatpush2.bf16.msra.mxu0 0
        %1324 = vmatprep.subr.bf16.mxu0 0
        %1325 = vmatpush2.bf16.msra.mxu0 0
        %1326 = vmatprep.subr.bf16.mxu0 0
        %1327 = vmatpush2.bf16.msra.mxu0 0
        %1328 = vmatprep.subr.bf16.mxu0 0
        %1329 = vmatpush2.bf16.msra.mxu0 0
        %1330 = vmatprep.subr.bf16.mxu0 0
        %1331 = vmatpush2.bf16.msra.mxu0 0
        %1332 = vmatprep.mubr.bf16.mxu0 0
        %1333 = vmatmul.mubr.bf16.gmra.mxu0 %v1295
        %v1334 = vpop.f32.mrf.mxu0
        %v1335 = vadd.f32 0.0, %v1334
        %v1336 = vpop.f32.mrf.mxu0
        %v1337 = vpop.f32.mrf.mxu0
        %v1338 = vpop.f32.mrf.mxu0
        %1339 = vdwg.mxu0
        %v1340 = vpack.c.bf16 %v1335, %v1335
        %v1342 = vunpack.c.l.b16 %v1340
        %v1343 = vpack.c.b16 %v1342, %v1342
        %1344 = vrot.lane.b32.xlu0 %v1343, 80
        %v1345 = vpop.permute.xlu0 %1344
        %vm1347 = vcmask 781952
        %1348 = vst.msk [vmem:[%s371] sm:$0xf] %vm1347, %v1345
        %1349 = vrot.lane.b32.xlu0 %v639, 32
        %v1350 = vpop.permute.xlu0 %1349
        %1351 = vrot.lane.b32.xlu0 %v527, 64
        %v1352 = vpop.permute.xlu0 %1351
        %v1354 = vsel %vm641, %v1350, 0
        %v1357 = vsel %vm641, %v1352, 0
        %1359 = vmatprep.subr.bf16.mxu0 0
        %1360 = vmatpush1.bf16.xpose.msra.mxu0 0
        %1361 = vmatprep.subr.bf16.mxu0 0
        %1362 = vmatpush1.bf16.xpose.msra.mxu0 0
        %1363 = vmatprep.subr.bf16.mxu0 0
        %1364 = vmatpush1.bf16.xpose.msra.mxu0 0
        %1365 = vmatprep.subr.bf16.mxu0 0
        %1366 = vmatpush1.bf16.xpose.msra.mxu0 0
        %1367 = vmatprep.subr.bf16.mxu0 0
        %1368 = vmatpush1.bf16.xpose.msra.mxu0 0
        %1369 = vmatprep.subr.bf16.mxu0 0
        %1370 = vmatpush1.bf16.xpose.msra.mxu0 0
        %1371 = vmatprep.subr.bf16.mxu0 0
        %1372 = vmatpush1.bf16.xpose.msra.mxu0 0
        %1373 = vmatprep.subr.bf16.mxu0 0
        %1374 = vmatpush1.bf16.xpose.msra.mxu0 %v1357
        %1375 = vmatprep.subr.bf16.mxu0 0
        %1376 = vmatpush2.bf16.xpose.msra.mxu0 0
        %1377 = vmatprep.subr.bf16.mxu0 0
        %1378 = vmatpush2.bf16.xpose.msra.mxu0 0
        %1379 = vmatprep.subr.bf16.mxu0 0
        %1380 = vmatpush2.bf16.xpose.msra.mxu0 0
        %1381 = vmatprep.subr.bf16.mxu0 0
        %1382 = vmatpush2.bf16.xpose.msra.mxu0 0
        %1383 = vmatprep.subr.bf16.mxu0 0
        %1384 = vmatpush2.bf16.xpose.msra.mxu0 0
        %1385 = vmatprep.subr.bf16.mxu0 0
        %1386 = vmatpush2.bf16.xpose.msra.mxu0 0
        %1387 = vmatprep.subr.bf16.mxu0 0
        %1388 = vmatpush2.bf16.xpose.msra.mxu0 0
        %1389 = vmatprep.subr.bf16.mxu0 0
        %1390 = vmatpush2.bf16.xpose.msra.mxu0 0
        %1391 = vmatprep.mubr.bf16.mxu0 0
        %1392 = vmatmul.mubr.bf16.gmra.mxu0 %v1354
        %v1393 = vpop.f32.mrf.mxu0
        %v1394 = vadd.f32 %v640, %v1393
        %v1395 = vpop.f32.mrf.mxu0
        %v1396 = vpop.f32.mrf.mxu0
        %v1397 = vpop.f32.mrf.mxu0
        %1398 = vdwg.mxu0
        %v1399 = vsel %vm688, %v1394, -inf
        %1400 = vmax.xlane.f32.xlu0 %v1399
        %v1401 = vpop.xlane.xlu0 %1400
        %v1402 = vsub.f32 %v1394, %v1401
        %v1403 = vmul.f32 %v1402, 1.442695
        %v1404 = vpow.pop %v1403
        %v1405 = vsel %vm688, %v1404, 0.0
        %1406 = vadd.xlane.f32.xlu0 %v1405
        %v1407 = vpop.xlane.xlu0 %1406
        %v1408 = vrcp.pop %v1407
        %v1409 = vmul.f32 %v1404, %v1408
        %v1410 = vpack.c.bf16 %v1409, %v1409
        %1411 = vrot.lane.b32.xlu0 %v527, 48
        %v1412 = vpop.permute.xlu0 %1411
        %v1414 = vsel %vm688, %v1410, 0
        %v1417 = vsel %vm707, %v1412, 0
        %1419 = vmatprep.subr.bf16.mxu0 0
        %1420 = vmatpush1.bf16.msra.mxu0 0
        %1421 = vmatprep.subr.bf16.mxu0 0
        %1422 = vmatpush1.bf16.msra.mxu0 0
        %1423 = vmatprep.subr.bf16.mxu0 0
        %1424 = vmatpush1.bf16.msra.mxu0 0
        %1425 = vmatprep.subr.bf16.mxu0 0
        %1426 = vmatpush1.bf16.msra.mxu0 0
        %1427 = vmatprep.subr.bf16.mxu0 0
        %1428 = vmatpush1.bf16.msra.mxu0 0
        %1429 = vmatprep.subr.bf16.mxu0 0
        %1430 = vmatpush1.bf16.msra.mxu0 0
        %1431 = vmatprep.subr.bf16.mxu0 0
        %1432 = vmatpush1.bf16.msra.mxu0 0
        %1433 = vmatprep.subr.bf16.mxu0 0
        %1434 = vmatpush1.bf16.msra.mxu0 %v1417
        %1435 = vmatprep.subr.bf16.mxu0 0
        %1436 = vmatpush2.bf16.msra.mxu0 0
        %1437 = vmatprep.subr.bf16.mxu0 0
        %1438 = vmatpush2.bf16.msra.mxu0 0
        %1439 = vmatprep.subr.bf16.mxu0 0
        %1440 = vmatpush2.bf16.msra.mxu0 0
        %1441 = vmatprep.subr.bf16.mxu0 0
        %1442 = vmatpush2.bf16.msra.mxu0 0
        %1443 = vmatprep.subr.bf16.mxu0 0
        %1444 = vmatpush2.bf16.msra.mxu0 0
        %1445 = vmatprep.subr.bf16.mxu0 0
        %1446 = vmatpush2.bf16.msra.mxu0 0
        %1447 = vmatprep.subr.bf16.mxu0 0
        %1448 = vmatpush2.bf16.msra.mxu0 0
        %1449 = vmatprep.subr.bf16.mxu0 0
        %1450 = vmatpush2.bf16.msra.mxu0 0
        %1451 = vmatprep.mubr.bf16.mxu0 0
        %1452 = vmatmul.mubr.bf16.gmra.mxu0 %v1414
        %v1453 = vpop.f32.mrf.mxu0
        %v1454 = vadd.f32 0.0, %v1453
        %v1455 = vpop.f32.mrf.mxu0
        %v1456 = vpop.f32.mrf.mxu0
        %v1457 = vpop.f32.mrf.mxu0
        %1458 = vdwg.mxu0
        %v1459 = vpack.c.bf16 %v1454, %v1454
        %v1461 = vunpack.c.l.b16 %v1459
        %v1462 = vpack.c.b16 %v1461, %v1461
        %1463 = vrot.lane.b32.xlu0 %v1462, 96
        %v1464 = vpop.permute.xlu0 %1463
        %vm1466 = vcmask 913152
        %1467 = vst.msk [vmem:[%s371] sm:$0xf] %vm1466, %v1464
        %1468 = vrot.lane.b32.xlu0 %v639, 16
        %v1469 = vpop.permute.xlu0 %1468
        %1470 = vrot.lane.b32.xlu0 %v527, 32
        %v1471 = vpop.permute.xlu0 %1470
        %v1473 = vsel %vm641, %v1469, 0
        %v1476 = vsel %vm641, %v1471, 0
        %1478 = vmatprep.subr.bf16.mxu0 0
        %1479 = vmatpush1.bf16.xpose.msra.mxu0 0
        %1480 = vmatprep.subr.bf16.mxu0 0
        %1481 = vmatpush1.bf16.xpose.msra.mxu0 0
        %1482 = vmatprep.subr.bf16.mxu0 0
        %1483 = vmatpush1.bf16.xpose.msra.mxu0 0
        %1484 = vmatprep.subr.bf16.mxu0 0
        %1485 = vmatpush1.bf16.xpose.msra.mxu0 0
        %1486 = vmatprep.subr.bf16.mxu0 0
        %1487 = vmatpush1.bf16.xpose.msra.mxu0 0
        %1488 = vmatprep.subr.bf16.mxu0 0
        %1489 = vmatpush1.bf16.xpose.msra.mxu0 0
        %1490 = vmatprep.subr.bf16.mxu0 0
        %1491 = vmatpush1.bf16.xpose.msra.mxu0 0
        %1492 = vmatprep.subr.bf16.mxu0 0
        %1493 = vmatpush1.bf16.xpose.msra.mxu0 %v1476
        %1494 = vmatprep.subr.bf16.mxu0 0
        %1495 = vmatpush2.bf16.xpose.msra.mxu0 0
        %1496 = vmatprep.subr.bf16.mxu0 0
        %1497 = vmatpush2.bf16.xpose.msra.mxu0 0
        %1498 = vmatprep.subr.bf16.mxu0 0
        %1499 = vmatpush2.bf16.xpose.msra.mxu0 0
        %1500 = vmatprep.subr.bf16.mxu0 0
        %1501 = vmatpush2.bf16.xpose.msra.mxu0 0
        %1502 = vmatprep.subr.bf16.mxu0 0
        %1503 = vmatpush2.bf16.xpose.msra.mxu0 0
        %1504 = vmatprep.subr.bf16.mxu0 0
        %1505 = vmatpush2.bf16.xpose.msra.mxu0 0
        %1506 = vmatprep.subr.bf16.mxu0 0
        %1507 = vmatpush2.bf16.xpose.msra.mxu0 0
        %1508 = vmatprep.subr.bf16.mxu0 0
        %1509 = vmatpush2.bf16.xpose.msra.mxu0 0
        %1510 = vmatprep.mubr.bf16.mxu0 0
        %1511 = vmatmul.mubr.bf16.gmra.mxu0 %v1473
        %v1512 = vpop.f32.mrf.mxu0
        %v1513 = vadd.f32 %v640, %v1512
        %v1514 = vpop.f32.mrf.mxu0
        %v1515 = vpop.f32.mrf.mxu0
        %v1516 = vpop.f32.mrf.mxu0
        %1517 = vdwg.mxu0
        %v1518 = vsel %vm688, %v1513, -inf
        %1519 = vmax.xlane.f32.xlu0 %v1518
        %v1520 = vpop.xlane.xlu0 %1519
        %v1521 = vsub.f32 %v1513, %v1520
        %v1522 = vmul.f32 %v1521, 1.442695
        %v1523 = vpow.pop %v1522
        %v1524 = vsel %vm688, %v1523, 0.0
        %1525 = vadd.xlane.f32.xlu0 %v1524
        %v1526 = vpop.xlane.xlu0 %1525
        %v1527 = vrcp.pop %v1526
        %v1528 = vmul.f32 %v1523, %v1527
        %v1529 = vpack.c.bf16 %v1528, %v1528
        %1530 = vrot.lane.b32.xlu0 %v527, 16
        %v1531 = vpop.permute.xlu0 %1530
        %v1533 = vsel %vm688, %v1529, 0
        %v1536 = vsel %vm707, %v1531, 0
        %1538 = vmatprep.subr.bf16.mxu0 0
        %1539 = vmatpush1.bf16.msra.mxu0 0
        %1540 = vmatprep.subr.bf16.mxu0 0
        %1541 = vmatpush1.bf16.msra.mxu0 0
        %1542 = vmatprep.subr.bf16.mxu0 0
        %1543 = vmatpush1.bf16.msra.mxu0 0
        %1544 = vmatprep.subr.bf16.mxu0 0
        %1545 = vmatpush1.bf16.msra.mxu0 0
        %1546 = vmatprep.subr.bf16.mxu0 0
        %1547 = vmatpush1.bf16.msra.mxu0 0
        %1548 = vmatprep.subr.bf16.mxu0 0
        %1549 = vmatpush1.bf16.msra.mxu0 0
        %1550 = vmatprep.subr.bf16.mxu0 0
        %1551 = vmatpush1.bf16.msra.mxu0 0
        %1552 = vmatprep.subr.bf16.mxu0 0
        %1553 = vmatpush1.bf16.msra.mxu0 %v1536
        %1554 = vmatprep.subr.bf16.mxu0 0
        %1555 = vmatpush2.bf16.msra.mxu0 0
        %1556 = vmatprep.subr.bf16.mxu0 0
        %1557 = vmatpush2.bf16.msra.mxu0 0
        %1558 = vmatprep.subr.bf16.mxu0 0
        %1559 = vmatpush2.bf16.msra.mxu0 0
        %1560 = vmatprep.subr.bf16.mxu0 0
        %1561 = vmatpush2.bf16.msra.mxu0 0
        %1562 = vmatprep.subr.bf16.mxu0 0
        %1563 = vmatpush2.bf16.msra.mxu0 0
        %1564 = vmatprep.subr.bf16.mxu0 0
        %1565 = vmatpush2.bf16.msra.mxu0 0
        %1566 = vmatprep.subr.bf16.mxu0 0
        %1567 = vmatpush2.bf16.msra.mxu0 0
        %1568 = vmatprep.subr.bf16.mxu0 0
        %1569 = vmatpush2.bf16.msra.mxu0 0
        %1570 = vmatprep.mubr.bf16.mxu0 0
        %1571 = vmatmul.mubr.bf16.gmra.mxu0 %v1533
        %v1572 = vpop.f32.mrf.mxu0
        %v1573 = vadd.f32 0.0, %v1572
        %v1574 = vpop.f32.mrf.mxu0
        %v1575 = vpop.f32.mrf.mxu0
        %v1576 = vpop.f32.mrf.mxu0
        %1577 = vdwg.mxu0
        %v1578 = vpack.c.bf16 %v1573, %v1573
        %v1580 = vunpack.c.l.b16 %v1578
        %v1581 = vpack.c.b16 %v1580, %v1580
        %1582 = vrot.lane.b32.xlu0 %v1581, 112
        %v1583 = vpop.permute.xlu0 %1582
        %vm1585 = vcmask 1044352
        %1586 = vst.msk [vmem:[%s371] sm:$0xf] %vm1585, %v1583
        %s1587 = sand.u32 %s193, 1
        %s1588 = scalar_lea.sflag [#allocation4], %s1587
        %s1589 = sand.u32 %s193, 1
        %s1590 = smul.addr %s1589, 4
        %s1591 = scalar_lea.vmem [#allocation11], %s1590
        // Predicated region
        $region69: #{tpu_custom_call.1} parent=47 // pred_check
          %p1592 = pneg %p203
        $region70: #{tpu_custom_call.1} parent=47 // pred_check_branch
          %1594 = sbr.rel (%p1592) target = $region72
        $region71: #{tpu_custom_call.1} parent=47 // pred_region
          %s1596 = ssub.s32 64, 64
          %1597 = vsyncadd %s1588, %s1596
          %s1598 = smul.addr %s28, 64
          %s1599 = scalar_lea.hbm %s7, %s1598
          %s1601 = sshll.u32 %s1591, 4
          %s1602 = int_to_ptr.vmem [resolvable:$true] %s1601
          %1604 = dma.vmem_to_hbm [thread:$0]  %s1602, 64, %s1599, %s1588
        $region72: #{tpu_custom_call.1} parent=47 // pred_fallthru
          _
      $region48: #{tpu_custom_call.1} parent=5 // pred_fallthru
        _
      %p1605 = scmp.le.s32.totalorder 2, %s23
      // Predicated region
      $region73: #{tpu_custom_call.1} parent=5 // pred_check
        %p1606 = pneg %p1605
      $region74: #{tpu_custom_call.1} parent=5 // pred_check_branch
        %1608 = sbr.rel (%p1606) target = $region76
      $region75: #{tpu_custom_call.1} parent=5 // pred_region
        %s1609 = ssub.s32 %s23, 2
        // Predicated region
        $region77: #{tpu_custom_call.1} parent=75 // pred_check
          %p1610 = pneg %p209
        $region78: #{tpu_custom_call.1} parent=75 // pred_check_branch
          %1612 = sbr.rel (%p1610) target = $region80
        $region79: #{tpu_custom_call.1} parent=75 // pred_region
          %s1613 = sand.u32 %s194, 1
          %s1614 = scalar_lea.sflag [#allocation4], %s1613
          %s1615 = sand.u32 %s194, 1
          %s1616 = smul.addr %s1615, 4
          %s1617 = scalar_lea.vmem [#allocation11], %s1616
          %1618 = dma.done %s1614, 64
        $region80: #{tpu_custom_call.1} parent=75 // pred_fallthru
          _
      $region76: #{tpu_custom_call.1} parent=5 // pred_fallthru
        _
    $region6: #{tpu_custom_call.1} parent=1 // loop_footer
      %s27 = sadd.s32 1, %s23
    $region7: #{tpu_custom_call.1} parent=1 // loop_footer_branch
      %22 = sbr.rel target = $region3
    $region8: #{tpu_custom_call.1} parent=1 // loop_exit
      _
    %1619 = vsyncpa [#allocation3], 1
    %s1620 = scalar_lea.sflag [#allocation3], 1
    %1621 = vsyncpa %s1620, 1
    %1622 = vsyncpa [#allocation6], 1
    %s1623 = scalar_lea.sflag [#allocation6], 1
    %1624 = vsyncpa %s1623, 1
    %1625 = vsyncpa [#allocation9], 1
    %1626 = vsyncpa [#allocation4], 1
    %s1627 = scalar_lea.sflag [#allocation4], 1
    %1628 = vsyncpa %s1627, 1

</llo_original>
